<compile_context>
chip_gen: v7x
topology: tpu7x:2x2x1
jax: 0.10.0
libtpu: 0.0.40
codegen_flags: <defaults>
</compile_context>

<pallas_src>
import math

import jax
import jax.numpy as jnp
from jax import lax
from jax.experimental import pallas as pl
from jax.experimental.pallas import tpu as pltpu


def glove_encoder_kernel(
    len_ref,      # [B, 1]   int32   sequence lengths
    x_ref,        # [B*T, D] bf16    batch-major flattened input (row = b*T + t)
    wih_ref,      # [D, 8H]  bf16    fused input weights  [fwd(i,f,o,g) | bwd(i,f,o,g)]
    bih_ref,      # [1, 8H]  f32     fused biases         [fwd          | bwd         ]
    whh_ref,      # [H, 8H]  bf16    fused hidden weights [Whh_f | Whh_b]
    wqkv_ref,     # [H, 3H]  bf16    fused attention projections [Wq | Wk | Wv]
    out_ref,      # [B, H]   f32     encoder output
):
    BT, _ = x_ref.shape
    B = len_ref.shape[0]
    T = BT // B
    H = whh_ref.shape[0]
    H2, H3, H4 = 2 * H, 3 * H, 4 * H

    lengths = len_ref[...]                                   # [B, 1] int32
    lengths2 = jnp.concatenate([lengths, lengths], axis=0)   # [2B, 1] (fwd rows | bwd rows)

    # ---- hoisted input projection: ONE bf16 MXU matmul for both directions and all
    #      timesteps, bias folded, f32 accumulation. Kept as a VALUE (no scratch).
    gp_all = (
        jnp.dot(x_ref[...], wih_ref[...], preferred_element_type=jnp.float32)
        + bih_ref[...]
    )                                                        # [B*T, 8H] f32, row = b*T + t

    def time_rows(mat, t):
        # rows {b*T + t : b in 0..B-1} -> [B, cols]; static slices (T, B static and
        # the loop is fully unrolled), scheduled off the recurrence critical path.
        return jnp.concatenate(
            [mat[b * T + t: b * T + t + 1, :] for b in range(B)], axis=0)

    whh = whh_ref[...]                                       # [H, 8H] bf16

    def cell(gates, c):
        # gate order (i, f, o, g): ONE sigmoid over 3H contiguous lanes + tanh(g)
        # + tanh(c_new) -> 3 EUP issues per step for BOTH directions.
        sig = jax.nn.sigmoid(gates[:, :H3])
        i_g = sig[:, 0:H]
        f_g = sig[:, H:H2]
        o_g = sig[:, H2:H3]
        g_g = jnp.tanh(gates[:, H3:H4])
        c_new = f_g * c + i_g * g_g
        h_new = o_g * jnp.tanh(c_new)
        return h_new, c_new

    zero2 = jnp.zeros((2 * B, H), jnp.float32)
    h2, c2 = zero2, zero2      # rows 0..B-1 = fwd state, rows B..2B-1 = bwd state

    fwd_outs = [None] * T      # masked fwd output at time t
    bwd_outs = [None] * T      # masked bwd output at time t

    # ---- fused fwd/bwd recurrence, fully unrolled (T small & static).
    #      ONE MXU op per step on the serialized dependency chain.
    for i in range(T):
        t_f = i
        t_b = T - 1 - i

        res = jnp.dot(h2.astype(jnp.bfloat16), whh,
                      preferred_element_type=jnp.float32)     # [2B, 8H]

        gates_f = time_rows(gp_all, t_f)[:, :H4] + res[:B, :H4]   # [B, 4H]
        gates_b = time_rows(gp_all, t_b)[:, H4:] + res[B:, H4:]   # [B, 4H]
        gates2 = jnp.concatenate([gates_f, gates_b], axis=0)      # [2B, 4H]

        h_new, c_new = cell(gates2, c2)

        # per-row time threshold: fwd rows compare against t_f, bwd rows against t_b
        tvec2 = jnp.concatenate(
            [jnp.full((B, 1), t_f, jnp.int32), jnp.full((B, 1), t_b, jnp.int32)],
            axis=0)
        valid2 = lengths2 > tvec2                                  # [2B, 1] bool

        # packed-sequence semantics: state held past the end, emitted output is 0.
        h2 = jnp.where(valid2, h_new, h2)
        c2 = jnp.where(valid2, c_new, c2)
        out2 = jnp.where(valid2, h_new, 0.0)                       # [2B, H]

        fwd_outs[t_f] = out2[:B]
        bwd_outs[t_b] = out2[B:]

    # ---- merge_bi='sum' and batch-major [B*T, H] seq slab (row = b*T + t), as values.
    merged = [fwd_outs[t] + bwd_outs[t] for t in range(T)]         # T x [B, H]
    seq_bm = jnp.concatenate(
        [merged[t][b:b + 1, :] for b in range(B) for t in range(T)], axis=0)  # [B*T, H]

    # ---- batched attention q/k/v projection: ONE matmul / weight push for all (b, t).
    qkv_all = jnp.dot(seq_bm.astype(jnp.bfloat16), wqkv_ref[...],
                      preferred_element_type=jnp.float32)          # [B*T, 3H]

    inv_sqrt_dk = 1.0 / math.sqrt(H)
    t_iota = lax.broadcasted_iota(jnp.int32, (1, T), 1)            # [1, T]
    key_valid = (t_iota < lengths).astype(jnp.float32)             # [B, T] (computed once)
    neg_mask = (1.0 - key_valid) * (-1e5)                          # additive key mask

    rows = []
    for b in range(B):                                             # B tiny & static: unroll
        qkv_b = qkv_all[b * T:(b + 1) * T, :]                      # [T, 3H] contiguous slice
        q_b = qkv_b[:, 0:H]
        k_b = qkv_b[:, H:H2]
        v_b = qkv_b[:, H2:H3]
        # scores[i, j] = <q_i, k_j> / sqrt(dk)
        scores = lax.dot_general(
            q_b, k_b, (((1,), (1,)), ((), ())),
            preferred_element_type=jnp.float32) * inv_sqrt_dk      # [T, T]
        scores = scores + neg_mask[b:b + 1, :]
        scores = scores - jnp.max(scores, axis=-1, keepdims=True)
        e = jnp.exp(scores)
        probs = e * pl.reciprocal(jnp.sum(e, axis=-1, keepdims=True), approx=True)
        att = jnp.dot(probs, v_b, preferred_element_type=jnp.float32)   # [T, H]
        rows.append(jnp.sum(att, axis=0, keepdims=True))           # [1, H] (out.sum(time))

    out_ref[...] = jnp.concatenate(rows, axis=0)                   # single batched store


def glove_encoder(x, lengths, params):
    """x: [B, T, D] (batch_first like PyTorch), lengths: [B] int. Returns [B, H]."""
    B, T, D = x.shape
    H = params["whh_f"].shape[0]

    def reorder_gates(w):
        # PyTorch LSTM gate order (i, f, g, o) -> (i, f, o, g) so the kernel can use
        # a single sigmoid over the first 3H lanes and a single tanh over the last H.
        return jnp.concatenate(
            [w[..., 0:2 * H], w[..., 3 * H:4 * H], w[..., 2 * H:3 * H]], axis=-1)

    wih_f = reorder_gates(params["wih_f"])
    wih_b = reorder_gates(params["wih_b"])
    whh_f = reorder_gates(params["whh_f"])
    whh_b = reorder_gates(params["whh_b"])
    b_f = reorder_gates(params["b_f"])
    b_b = reorder_gates(params["b_b"])

    # fused weights; matmul operands in bf16 (f32 accumulation in the kernel)
    wih_cat = jnp.concatenate([wih_f, wih_b], axis=1).astype(jnp.bfloat16)   # [D, 8H]
    whh_cat = jnp.concatenate([whh_f, whh_b], axis=1).astype(jnp.bfloat16)   # [H, 8H]
    b_cat = jnp.concatenate([b_f, b_b], axis=1).astype(jnp.float32)          # [1, 8H]
    wqkv = jnp.concatenate(
        [params["wq"], params["wk"], params["wv"]], axis=1).astype(jnp.bfloat16)  # [H, 3H]

    # Batch-major flatten (row = b*T + t): a free reshape, no time-major transpose
    # (no extra HBM round trip on the input).
    x_flat = x.reshape(B * T, D).astype(jnp.bfloat16)
    len2 = lengths.astype(jnp.int32).reshape(B, 1)

    vmem = pl.BlockSpec(memory_space=pltpu.MemorySpace.VMEM)
    return pl.pallas_call(
        glove_encoder_kernel,
        out_shape=jax.ShapeDtypeStruct((B, H), jnp.float32),
        in_specs=[vmem] * 6,
        out_specs=vmem,
    )(len2, x_flat, wih_cat, b_cat, whh_cat, wqkv)


if __name__ == "__main__":
    # synthetic cfg consistent with the module's __init__
    cfg = dict(input_size=32, hidden_size=32, layers=1, bidirectional=True,
               dropout=0.0, rnn_type="lstm", attention=True, return_hidden=False)
    B, T = 2, 8
    D, H = cfg["input_size"], cfg["hidden_size"]

    key = jax.random.PRNGKey(0)
    ks = jax.random.split(key, 12)
    scale = 1.0 / math.sqrt(H)

    def u(k, shape):
        return jax.random.uniform(k, shape, jnp.float32, -scale, scale)

    # params laid out exactly as a PyTorch LSTM export would be (gate order i,f,g,o,
    # weights already transposed to [in, 4H]); the wrapper does the (i,f,o,g) permute.
    params = {
        "wih_f": u(ks[0], (D, 4 * H)),
        "whh_f": u(ks[1], (H, 4 * H)),
        "b_f":   u(ks[2], (1, 4 * H)),
        "wih_b": u(ks[3], (D, 4 * H)),
        "whh_b": u(ks[4], (H, 4 * H)),
        "b_b":   u(ks[5], (1, 4 * H)),
        "wq":    u(ks[6], (H, H)),
        "wk":    u(ks[7], (H, H)),
        "wv":    u(ks[8], (H, H)),
    }

    x = jax.random.normal(ks[9], (B, T, D), jnp.float32)
    lengths = jnp.array([T, 5], dtype=jnp.int32)

    out = glove_encoder(x, lengths, params)
    out = jax.block_until_ready(out)
    assert out.shape == (B, H)
    assert bool(jnp.all(jnp.isfinite(out)))
    print("KERNEL_OK")
</pallas_src>

<mosaic_0001>
module attributes {stable_mosaic.version = 11 : i64} {
  func.func @glove_encoder_kernel(%arg0: memref<2x1xi32, #tpu.memory_space<vmem>>, %arg1: memref<16x32xbf16, #tpu.memory_space<vmem>>, %arg2: memref<32x256xbf16, #tpu.memory_space<vmem>>, %arg3: memref<1x256xf32, #tpu.memory_space<vmem>>, %arg4: memref<32x256xbf16, #tpu.memory_space<vmem>>, %arg5: memref<32x96xbf16, #tpu.memory_space<vmem>>, %arg6: memref<2x32xf32, #tpu.memory_space<vmem>>) attributes {dimension_semantics = [], scalar_prefetch = 0 : i64, scratch_operands = 0 : i64, tpu.core_type = #tpu.core_type<tc>} {
    %c0 = arith.constant 0 : index
    %c0_0 = arith.constant 0 : index
    %0 = vector.load %arg0[%c0, %c0_0] : memref<2x1xi32, #tpu.memory_space<vmem>>, vector<2x1xi32>
    %1 = tpu.concatenate %0, %0 in 0 : vector<2x1xi32>, vector<2x1xi32> -> vector<4x1xi32>
    %c0_1 = arith.constant 0 : index
    %c0_2 = arith.constant 0 : index
    %2 = vector.load %arg1[%c0_1, %c0_2] : memref<16x32xbf16, #tpu.memory_space<vmem>>, vector<16x32xbf16>
    %c0_3 = arith.constant 0 : index
    %c0_4 = arith.constant 0 : index
    %3 = vector.load %arg2[%c0_3, %c0_4] : memref<32x256xbf16, #tpu.memory_space<vmem>>, vector<32x256xbf16>
    %cst = arith.constant dense<0.000000e+00> : vector<16x256xf32>
    %4 = tpu.matmul %2, %3, %cst {dimension_numbers = #tpu.dot_dimension_numbers<[1], [0], [0], [1], [0, 0, 1, 1], [], []>} : vector<16x32xbf16>, vector<32x256xbf16>, vector<16x256xf32> -> vector<16x256xf32>
    %c0_5 = arith.constant 0 : index
    %c0_6 = arith.constant 0 : index
    %5 = vector.load %arg3[%c0_5, %c0_6] : memref<1x256xf32, #tpu.memory_space<vmem>>, vector<1x256xf32>
    %6 = vector.broadcast %5 : vector<1x256xf32> to vector<16x256xf32>
    %7 = arith.addf %4, %6 : vector<16x256xf32>
    %c0_7 = arith.constant 0 : index
    %c0_8 = arith.constant 0 : index
    %8 = vector.load %arg4[%c0_7, %c0_8] : memref<32x256xbf16, #tpu.memory_space<vmem>>, vector<32x256xbf16>
    %cst_9 = arith.constant 0.000000e+00 : f32
    %9 = vector.broadcast %cst_9 : f32 to vector<4x32xf32>
    %10 = arith.truncf %9 : vector<4x32xf32> to vector<4x32xbf16>
    %cst_10 = arith.constant dense<0.000000e+00> : vector<4x256xf32>
    %11 = tpu.matmul %10, %8, %cst_10 {dimension_numbers = #tpu.dot_dimension_numbers<[1], [0], [0], [1], [0, 0, 1, 1], [], []>} : vector<4x32xbf16>, vector<32x256xbf16>, vector<4x256xf32> -> vector<4x256xf32>
    %12 = vector.extract_strided_slice %7 {offsets = [0, 0], sizes = [1, 256], strides = [1, 1]} : vector<16x256xf32> to vector<1x256xf32>
    %13 = vector.extract_strided_slice %7 {offsets = [8, 0], sizes = [1, 256], strides = [1, 1]} : vector<16x256xf32> to vector<1x256xf32>
    %14 = tpu.concatenate %12, %13 in 0 : vector<1x256xf32>, vector<1x256xf32> -> vector<2x256xf32>
    %15 = vector.extract_strided_slice %14 {offsets = [0, 0], sizes = [2, 128], strides = [1, 1]} : vector<2x256xf32> to vector<2x128xf32>
    %16 = vector.extract_strided_slice %11 {offsets = [0, 0], sizes = [2, 128], strides = [1, 1]} : vector<4x256xf32> to vector<2x128xf32>
    %17 = arith.addf %15, %16 : vector<2x128xf32>
    %18 = vector.extract_strided_slice %7 {offsets = [7, 0], sizes = [1, 256], strides = [1, 1]} : vector<16x256xf32> to vector<1x256xf32>
    %19 = vector.extract_strided_slice %7 {offsets = [15, 0], sizes = [1, 256], strides = [1, 1]} : vector<16x256xf32> to vector<1x256xf32>
    %20 = tpu.concatenate %18, %19 in 0 : vector<1x256xf32>, vector<1x256xf32> -> vector<2x256xf32>
    %21 = vector.extract_strided_slice %20 {offsets = [0, 128], sizes = [2, 128], strides = [1, 1]} : vector<2x256xf32> to vector<2x128xf32>
    %22 = vector.extract_strided_slice %11 {offsets = [2, 128], sizes = [2, 128], strides = [1, 1]} : vector<4x256xf32> to vector<2x128xf32>
    %23 = arith.addf %21, %22 : vector<2x128xf32>
    %24 = tpu.concatenate %17, %23 in 0 : vector<2x128xf32>, vector<2x128xf32> -> vector<4x128xf32>
    %25 = vector.extract_strided_slice %24 {offsets = [0, 0], sizes = [4, 96], strides = [1, 1]} : vector<4x128xf32> to vector<4x96xf32>
    %26 = arith.negf %25 : vector<4x96xf32>
    %27 = math.exp %26 : vector<4x96xf32>
    %cst_11 = arith.constant 1.000000e+00 : f32
    %28 = vector.broadcast %cst_11 : f32 to vector<4x96xf32>
    %29 = arith.addf %28, %27 : vector<4x96xf32>
    %30 = arith.divf %28, %29 : vector<4x96xf32>
    %31 = vector.extract_strided_slice %30 {offsets = [0, 0], sizes = [4, 32], strides = [1, 1]} : vector<4x96xf32> to vector<4x32xf32>
    %32 = vector.extract_strided_slice %30 {offsets = [0, 32], sizes = [4, 32], strides = [1, 1]} : vector<4x96xf32> to vector<4x32xf32>
    %33 = vector.extract_strided_slice %30 {offsets = [0, 64], sizes = [4, 32], strides = [1, 1]} : vector<4x96xf32> to vector<4x32xf32>
    %34 = vector.extract_strided_slice %24 {offsets = [0, 96], sizes = [4, 32], strides = [1, 1]} : vector<4x128xf32> to vector<4x32xf32>
    %35 = math.tanh %34 : vector<4x32xf32>
    %36 = arith.mulf %32, %9 : vector<4x32xf32>
    %37 = arith.mulf %31, %35 : vector<4x32xf32>
    %38 = arith.addf %36, %37 : vector<4x32xf32>
    %39 = math.tanh %38 : vector<4x32xf32>
    %40 = arith.mulf %33, %39 : vector<4x32xf32>
    %c0_i32 = arith.constant 0 : i32
    %41 = vector.broadcast %c0_i32 : i32 to vector<2x1xi32>
    %c7_i32 = arith.constant 7 : i32
    %42 = vector.broadcast %c7_i32 : i32 to vector<2x1xi32>
    %43 = tpu.concatenate %41, %42 in 0 : vector<2x1xi32>, vector<2x1xi32> -> vector<4x1xi32>
    %44 = arith.cmpi sgt, %1, %43 : vector<4x1xi32>
    %45 = vector.shape_cast %44 : vector<4x1xi1> to vector<4x1xi1>
    %46 = vector.broadcast %45 : vector<4x1xi1> to vector<4x32xi1>
    %47 = arith.select %46, %40, %9 : vector<4x32xi1>, vector<4x32xf32>
    %48 = vector.shape_cast %44 : vector<4x1xi1> to vector<4x1xi1>
    %49 = vector.broadcast %48 : vector<4x1xi1> to vector<4x32xi1>
    %50 = arith.select %49, %38, %9 : vector<4x32xi1>, vector<4x32xf32>
    %cst_12 = arith.constant 0.000000e+00 : f32
    %51 = vector.shape_cast %44 : vector<4x1xi1> to vector<4x1xi1>
    %52 = vector.broadcast %51 : vector<4x1xi1> to vector<4x32xi1>
    %53 = vector.broadcast %cst_12 : f32 to vector<4x32xf32>
    %54 = arith.select %52, %40, %53 : vector<4x32xi1>, vector<4x32xf32>
    %55 = vector.extract_strided_slice %54 {offsets = [0, 0], sizes = [2, 32], strides = [1, 1]} : vector<4x32xf32> to vector<2x32xf32>
    %56 = vector.extract_strided_slice %54 {offsets = [2, 0], sizes = [2, 32], strides = [1, 1]} : vector<4x32xf32> to vector<2x32xf32>
    %57 = arith.truncf %47 : vector<4x32xf32> to vector<4x32xbf16>
    %cst_13 = arith.constant dense<0.000000e+00> : vector<4x256xf32>
    %58 = tpu.matmul %57, %8, %cst_13 {dimension_numbers = #tpu.dot_dimension_numbers<[1], [0], [0], [1], [0, 0, 1, 1], [], []>} : vector<4x32xbf16>, vector<32x256xbf16>, vector<4x256xf32> -> vector<4x256xf32>
    %59 = vector.extract_strided_slice %7 {offsets = [1, 0], sizes = [1, 256], strides = [1, 1]} : vector<16x256xf32> to vector<1x256xf32>
    %60 = vector.extract_strided_slice %7 {offsets = [9, 0], sizes = [1, 256], strides = [1, 1]} : vector<16x256xf32> to vector<1x256xf32>
    %61 = tpu.concatenate %59, %60 in 0 : vector<1x256xf32>, vector<1x256xf32> -> vector<2x256xf32>
    %62 = vector.extract_strided_slice %61 {offsets = [0, 0], sizes = [2, 128], strides = [1, 1]} : vector<2x256xf32> to vector<2x128xf32>
    %63 = vector.extract_strided_slice %58 {offsets = [0, 0], sizes = [2, 128], strides = [1, 1]} : vector<4x256xf32> to vector<2x128xf32>
    %64 = arith.addf %62, %63 : vector<2x128xf32>
    %65 = vector.extract_strided_slice %7 {offsets = [6, 0], sizes = [1, 256], strides = [1, 1]} : vector<16x256xf32> to vector<1x256xf32>
    %66 = vector.extract_strided_slice %7 {offsets = [14, 0], sizes = [1, 256], strides = [1, 1]} : vector<16x256xf32> to vector<1x256xf32>
    %67 = tpu.concatenate %65, %66 in 0 : vector<1x256xf32>, vector<1x256xf32> -> vector<2x256xf32>
    %68 = vector.extract_strided_slice %67 {offsets = [0, 128], sizes = [2, 128], strides = [1, 1]} : vector<2x256xf32> to vector<2x128xf32>
    %69 = vector.extract_strided_slice %58 {offsets = [2, 128], sizes = [2, 128], strides = [1, 1]} : vector<4x256xf32> to vector<2x128xf32>
    %70 = arith.addf %68, %69 : vector<2x128xf32>
    %71 = tpu.concatenate %64, %70 in 0 : vector<2x128xf32>, vector<2x128xf32> -> vector<4x128xf32>
    %72 = vector.extract_strided_slice %71 {offsets = [0, 0], sizes = [4, 96], strides = [1, 1]} : vector<4x128xf32> to vector<4x96xf32>
    %73 = arith.negf %72 : vector<4x96xf32>
    %74 = math.exp %73 : vector<4x96xf32>
    %cst_14 = arith.constant 1.000000e+00 : f32
    %75 = vector.broadcast %cst_14 : f32 to vector<4x96xf32>
    %76 = arith.addf %75, %74 : vector<4x96xf32>
    %77 = arith.divf %75, %76 : vector<4x96xf32>
    %78 = vector.extract_strided_slice %77 {offsets = [0, 0], sizes = [4, 32], strides = [1, 1]} : vector<4x96xf32> to vector<4x32xf32>
    %79 = vector.extract_strided_slice %77 {offsets = [0, 32], sizes = [4, 32], strides = [1, 1]} : vector<4x96xf32> to vector<4x32xf32>
    %80 = vector.extract_strided_slice %77 {offsets = [0, 64], sizes = [4, 32], strides = [1, 1]} : vector<4x96xf32> to vector<4x32xf32>
    %81 = vector.extract_strided_slice %71 {offsets = [0, 96], sizes = [4, 32], strides = [1, 1]} : vector<4x128xf32> to vector<4x32xf32>
    %82 = math.tanh %81 : vector<4x32xf32>
    %83 = arith.mulf %79, %50 : vector<4x32xf32>
    %84 = arith.mulf %78, %82 : vector<4x32xf32>
    %85 = arith.addf %83, %84 : vector<4x32xf32>
    %86 = math.tanh %85 : vector<4x32xf32>
    %87 = arith.mulf %80, %86 : vector<4x32xf32>
    %c1_i32 = arith.constant 1 : i32
    %88 = vector.broadcast %c1_i32 : i32 to vector<2x1xi32>
    %c6_i32 = arith.constant 6 : i32
    %89 = vector.broadcast %c6_i32 : i32 to vector<2x1xi32>
    %90 = tpu.concatenate %88, %89 in 0 : vector<2x1xi32>, vector<2x1xi32> -> vector<4x1xi32>
    %91 = arith.cmpi sgt, %1, %90 : vector<4x1xi32>
    %92 = vector.shape_cast %91 : vector<4x1xi1> to vector<4x1xi1>
    %93 = vector.broadcast %92 : vector<4x1xi1> to vector<4x32xi1>
    %94 = arith.select %93, %87, %47 : vector<4x32xi1>, vector<4x32xf32>
    %95 = vector.shape_cast %91 : vector<4x1xi1> to vector<4x1xi1>
    %96 = vector.broadcast %95 : vector<4x1xi1> to vector<4x32xi1>
    %97 = arith.select %96, %85, %50 : vector<4x32xi1>, vector<4x32xf32>
    %cst_15 = arith.constant 0.000000e+00 : f32
    %98 = vector.shape_cast %91 : vector<4x1xi1> to vector<4x1xi1>
    %99 = vector.broadcast %98 : vector<4x1xi1> to vector<4x32xi1>
    %100 = vector.broadcast %cst_15 : f32 to vector<4x32xf32>
    %101 = arith.select %99, %87, %100 : vector<4x32xi1>, vector<4x32xf32>
    %102 = vector.extract_strided_slice %101 {offsets = [0, 0], sizes = [2, 32], strides = [1, 1]} : vector<4x32xf32> to vector<2x32xf32>
    %103 = vector.extract_strided_slice %101 {offsets = [2, 0], sizes = [2, 32], strides = [1, 1]} : vector<4x32xf32> to vector<2x32xf32>
    %104 = arith.truncf %94 : vector<4x32xf32> to vector<4x32xbf16>
    %cst_16 = arith.constant dense<0.000000e+00> : vector<4x256xf32>
    %105 = tpu.matmul %104, %8, %cst_16 {dimension_numbers = #tpu.dot_dimension_numbers<[1], [0], [0], [1], [0, 0, 1, 1], [], []>} : vector<4x32xbf16>, vector<32x256xbf16>, vector<4x256xf32> -> vector<4x256xf32>
    %106 = vector.extract_strided_slice %7 {offsets = [2, 0], sizes = [1, 256], strides = [1, 1]} : vector<16x256xf32> to vector<1x256xf32>
    %107 = vector.extract_strided_slice %7 {offsets = [10, 0], sizes = [1, 256], strides = [1, 1]} : vector<16x256xf32> to vector<1x256xf32>
    %108 = tpu.concatenate %106, %107 in 0 : vector<1x256xf32>, vector<1x256xf32> -> vector<2x256xf32>
    %109 = vector.extract_strided_slice %108 {offsets = [0, 0], sizes = [2, 128], strides = [1, 1]} : vector<2x256xf32> to vector<2x128xf32>
    %110 = vector.extract_strided_slice %105 {offsets = [0, 0], sizes = [2, 128], strides = [1, 1]} : vector<4x256xf32> to vector<2x128xf32>
    %111 = arith.addf %109, %110 : vector<2x128xf32>
    %112 = vector.extract_strided_slice %7 {offsets = [5, 0], sizes = [1, 256], strides = [1, 1]} : vector<16x256xf32> to vector<1x256xf32>
    %113 = vector.extract_strided_slice %7 {offsets = [13, 0], sizes = [1, 256], strides = [1, 1]} : vector<16x256xf32> to vector<1x256xf32>
    %114 = tpu.concatenate %112, %113 in 0 : vector<1x256xf32>, vector<1x256xf32> -> vector<2x256xf32>
    %115 = vector.extract_strided_slice %114 {offsets = [0, 128], sizes = [2, 128], strides = [1, 1]} : vector<2x256xf32> to vector<2x128xf32>
    %116 = vector.extract_strided_slice %105 {offsets = [2, 128], sizes = [2, 128], strides = [1, 1]} : vector<4x256xf32> to vector<2x128xf32>
    %117 = arith.addf %115, %116 : vector<2x128xf32>
    %118 = tpu.concatenate %111, %117 in 0 : vector<2x128xf32>, vector<2x128xf32> -> vector<4x128xf32>
    %119 = vector.extract_strided_slice %118 {offsets = [0, 0], sizes = [4, 96], strides = [1, 1]} : vector<4x128xf32> to vector<4x96xf32>
    %120 = arith.negf %119 : vector<4x96xf32>
    %121 = math.exp %120 : vector<4x96xf32>
    %cst_17 = arith.constant 1.000000e+00 : f32
    %122 = vector.broadcast %cst_17 : f32 to vector<4x96xf32>
    %123 = arith.addf %122, %121 : vector<4x96xf32>
    %124 = arith.divf %122, %123 : vector<4x96xf32>
    %125 = vector.extract_strided_slice %124 {offsets = [0, 0], sizes = [4, 32], strides = [1, 1]} : vector<4x96xf32> to vector<4x32xf32>
    %126 = vector.extract_strided_slice %124 {offsets = [0, 32], sizes = [4, 32], strides = [1, 1]} : vector<4x96xf32> to vector<4x32xf32>
    %127 = vector.extract_strided_slice %124 {offsets = [0, 64], sizes = [4, 32], strides = [1, 1]} : vector<4x96xf32> to vector<4x32xf32>
    %128 = vector.extract_strided_slice %118 {offsets = [0, 96], sizes = [4, 32], strides = [1, 1]} : vector<4x128xf32> to vector<4x32xf32>
    %129 = math.tanh %128 : vector<4x32xf32>
    %130 = arith.mulf %126, %97 : vector<4x32xf32>
    %131 = arith.mulf %125, %129 : vector<4x32xf32>
    %132 = arith.addf %130, %131 : vector<4x32xf32>
    %133 = math.tanh %132 : vector<4x32xf32>
    %134 = arith.mulf %127, %133 : vector<4x32xf32>
    %c2_i32 = arith.constant 2 : i32
    %135 = vector.broadcast %c2_i32 : i32 to vector<2x1xi32>
    %c5_i32 = arith.constant 5 : i32
    %136 = vector.broadcast %c5_i32 : i32 to vector<2x1xi32>
    %137 = tpu.concatenate %135, %136 in 0 : vector<2x1xi32>, vector<2x1xi32> -> vector<4x1xi32>
    %138 = arith.cmpi sgt, %1, %137 : vector<4x1xi32>
    %139 = vector.shape_cast %138 : vector<4x1xi1> to vector<4x1xi1>
    %140 = vector.broadcast %139 : vector<4x1xi1> to vector<4x32xi1>
    %141 = arith.select %140, %134, %94 : vector<4x32xi1>, vector<4x32xf32>
    %142 = vector.shape_cast %138 : vector<4x1xi1> to vector<4x1xi1>
    %143 = vector.broadcast %142 : vector<4x1xi1> to vector<4x32xi1>
    %144 = arith.select %143, %132, %97 : vector<4x32xi1>, vector<4x32xf32>
    %cst_18 = arith.constant 0.000000e+00 : f32
    %145 = vector.shape_cast %138 : vector<4x1xi1> to vector<4x1xi1>
    %146 = vector.broadcast %145 : vector<4x1xi1> to vector<4x32xi1>
    %147 = vector.broadcast %cst_18 : f32 to vector<4x32xf32>
    %148 = arith.select %146, %134, %147 : vector<4x32xi1>, vector<4x32xf32>
    %149 = vector.extract_strided_slice %148 {offsets = [0, 0], sizes = [2, 32], strides = [1, 1]} : vector<4x32xf32> to vector<2x32xf32>
    %150 = vector.extract_strided_slice %148 {offsets = [2, 0], sizes = [2, 32], strides = [1, 1]} : vector<4x32xf32> to vector<2x32xf32>
    %151 = arith.truncf %141 : vector<4x32xf32> to vector<4x32xbf16>
    %cst_19 = arith.constant dense<0.000000e+00> : vector<4x256xf32>
    %152 = tpu.matmul %151, %8, %cst_19 {dimension_numbers = #tpu.dot_dimension_numbers<[1], [0], [0], [1], [0, 0, 1, 1], [], []>} : vector<4x32xbf16>, vector<32x256xbf16>, vector<4x256xf32> -> vector<4x256xf32>
    %153 = vector.extract_strided_slice %7 {offsets = [3, 0], sizes = [1, 256], strides = [1, 1]} : vector<16x256xf32> to vector<1x256xf32>
    %154 = vector.extract_strided_slice %7 {offsets = [11, 0], sizes = [1, 256], strides = [1, 1]} : vector<16x256xf32> to vector<1x256xf32>
    %155 = tpu.concatenate %153, %154 in 0 : vector<1x256xf32>, vector<1x256xf32> -> vector<2x256xf32>
    %156 = vector.extract_strided_slice %155 {offsets = [0, 0], sizes = [2, 128], strides = [1, 1]} : vector<2x256xf32> to vector<2x128xf32>
    %157 = vector.extract_strided_slice %152 {offsets = [0, 0], sizes = [2, 128], strides = [1, 1]} : vector<4x256xf32> to vector<2x128xf32>
    %158 = arith.addf %156, %157 : vector<2x128xf32>
    %159 = vector.extract_strided_slice %7 {offsets = [4, 0], sizes = [1, 256], strides = [1, 1]} : vector<16x256xf32> to vector<1x256xf32>
    %160 = vector.extract_strided_slice %7 {offsets = [12, 0], sizes = [1, 256], strides = [1, 1]} : vector<16x256xf32> to vector<1x256xf32>
    %161 = tpu.concatenate %159, %160 in 0 : vector<1x256xf32>, vector<1x256xf32> -> vector<2x256xf32>
    %162 = vector.extract_strided_slice %161 {offsets = [0, 128], sizes = [2, 128], strides = [1, 1]} : vector<2x256xf32> to vector<2x128xf32>
    %163 = vector.extract_strided_slice %152 {offsets = [2, 128], sizes = [2, 128], strides = [1, 1]} : vector<4x256xf32> to vector<2x128xf32>
    %164 = arith.addf %162, %163 : vector<2x128xf32>
    %165 = tpu.concatenate %158, %164 in 0 : vector<2x128xf32>, vector<2x128xf32> -> vector<4x128xf32>
    %166 = vector.extract_strided_slice %165 {offsets = [0, 0], sizes = [4, 96], strides = [1, 1]} : vector<4x128xf32> to vector<4x96xf32>
    %167 = arith.negf %166 : vector<4x96xf32>
    %168 = math.exp %167 : vector<4x96xf32>
    %cst_20 = arith.constant 1.000000e+00 : f32
    %169 = vector.broadcast %cst_20 : f32 to vector<4x96xf32>
    %170 = arith.addf %169, %168 : vector<4x96xf32>
    %171 = arith.divf %169, %170 : vector<4x96xf32>
    %172 = vector.extract_strided_slice %171 {offsets = [0, 0], sizes = [4, 32], strides = [1, 1]} : vector<4x96xf32> to vector<4x32xf32>
    %173 = vector.extract_strided_slice %171 {offsets = [0, 32], sizes = [4, 32], strides = [1, 1]} : vector<4x96xf32> to vector<4x32xf32>
    %174 = vector.extract_strided_slice %171 {offsets = [0, 64], sizes = [4, 32], strides = [1, 1]} : vector<4x96xf32> to vector<4x32xf32>
    %175 = vector.extract_strided_slice %165 {offsets = [0, 96], sizes = [4, 32], strides = [1, 1]} : vector<4x128xf32> to vector<4x32xf32>
    %176 = math.tanh %175 : vector<4x32xf32>
    %177 = arith.mulf %173, %144 : vector<4x32xf32>
    %178 = arith.mulf %172, %176 : vector<4x32xf32>
    %179 = arith.addf %177, %178 : vector<4x32xf32>
    %180 = math.tanh %179 : vector<4x32xf32>
    %181 = arith.mulf %174, %180 : vector<4x32xf32>
    %c3_i32 = arith.constant 3 : i32
    %182 = vector.broadcast %c3_i32 : i32 to vector<2x1xi32>
    %c4_i32 = arith.constant 4 : i32
    %183 = vector.broadcast %c4_i32 : i32 to vector<2x1xi32>
    %184 = tpu.concatenate %182, %183 in 0 : vector<2x1xi32>, vector<2x1xi32> -> vector<4x1xi32>
    %185 = arith.cmpi sgt, %1, %184 : vector<4x1xi32>
    %186 = vector.shape_cast %185 : vector<4x1xi1> to vector<4x1xi1>
    %187 = vector.broadcast %186 : vector<4x1xi1> to vector<4x32xi1>
    %188 = arith.select %187, %181, %141 : vector<4x32xi1>, vector<4x32xf32>
    %189 = vector.shape_cast %185 : vector<4x1xi1> to vector<4x1xi1>
    %190 = vector.broadcast %189 : vector<4x1xi1> to vector<4x32xi1>
    %191 = arith.select %190, %179, %144 : vector<4x32xi1>, vector<4x32xf32>
    %cst_21 = arith.constant 0.000000e+00 : f32
    %192 = vector.shape_cast %185 : vector<4x1xi1> to vector<4x1xi1>
    %193 = vector.broadcast %192 : vector<4x1xi1> to vector<4x32xi1>
    %194 = vector.broadcast %cst_21 : f32 to vector<4x32xf32>
    %195 = arith.select %193, %181, %194 : vector<4x32xi1>, vector<4x32xf32>
    %196 = vector.extract_strided_slice %195 {offsets = [0, 0], sizes = [2, 32], strides = [1, 1]} : vector<4x32xf32> to vector<2x32xf32>
    %197 = vector.extract_strided_slice %195 {offsets = [2, 0], sizes = [2, 32], strides = [1, 1]} : vector<4x32xf32> to vector<2x32xf32>
    %198 = arith.truncf %188 : vector<4x32xf32> to vector<4x32xbf16>
    %cst_22 = arith.constant dense<0.000000e+00> : vector<4x256xf32>
    %199 = tpu.matmul %198, %8, %cst_22 {dimension_numbers = #tpu.dot_dimension_numbers<[1], [0], [0], [1], [0, 0, 1, 1], [], []>} : vector<4x32xbf16>, vector<32x256xbf16>, vector<4x256xf32> -> vector<4x256xf32>
    %200 = vector.extract_strided_slice %7 {offsets = [4, 0], sizes = [1, 256], strides = [1, 1]} : vector<16x256xf32> to vector<1x256xf32>
    %201 = vector.extract_strided_slice %7 {offsets = [12, 0], sizes = [1, 256], strides = [1, 1]} : vector<16x256xf32> to vector<1x256xf32>
    %202 = tpu.concatenate %200, %201 in 0 : vector<1x256xf32>, vector<1x256xf32> -> vector<2x256xf32>
    %203 = vector.extract_strided_slice %202 {offsets = [0, 0], sizes = [2, 128], strides = [1, 1]} : vector<2x256xf32> to vector<2x128xf32>
    %204 = vector.extract_strided_slice %199 {offsets = [0, 0], sizes = [2, 128], strides = [1, 1]} : vector<4x256xf32> to vector<2x128xf32>
    %205 = arith.addf %203, %204 : vector<2x128xf32>
    %206 = vector.extract_strided_slice %7 {offsets = [3, 0], sizes = [1, 256], strides = [1, 1]} : vector<16x256xf32> to vector<1x256xf32>
    %207 = vector.extract_strided_slice %7 {offsets = [11, 0], sizes = [1, 256], strides = [1, 1]} : vector<16x256xf32> to vector<1x256xf32>
    %208 = tpu.concatenate %206, %207 in 0 : vector<1x256xf32>, vector<1x256xf32> -> vector<2x256xf32>
    %209 = vector.extract_strided_slice %208 {offsets = [0, 128], sizes = [2, 128], strides = [1, 1]} : vector<2x256xf32> to vector<2x128xf32>
    %210 = vector.extract_strided_slice %199 {offsets = [2, 128], sizes = [2, 128], strides = [1, 1]} : vector<4x256xf32> to vector<2x128xf32>
    %211 = arith.addf %209, %210 : vector<2x128xf32>
    %212 = tpu.concatenate %205, %211 in 0 : vector<2x128xf32>, vector<2x128xf32> -> vector<4x128xf32>
    %213 = vector.extract_strided_slice %212 {offsets = [0, 0], sizes = [4, 96], strides = [1, 1]} : vector<4x128xf32> to vector<4x96xf32>
    %214 = arith.negf %213 : vector<4x96xf32>
    %215 = math.exp %214 : vector<4x96xf32>
    %cst_23 = arith.constant 1.000000e+00 : f32
    %216 = vector.broadcast %cst_23 : f32 to vector<4x96xf32>
    %217 = arith.addf %216, %215 : vector<4x96xf32>
    %218 = arith.divf %216, %217 : vector<4x96xf32>
    %219 = vector.extract_strided_slice %218 {offsets = [0, 0], sizes = [4, 32], strides = [1, 1]} : vector<4x96xf32> to vector<4x32xf32>
    %220 = vector.extract_strided_slice %218 {offsets = [0, 32], sizes = [4, 32], strides = [1, 1]} : vector<4x96xf32> to vector<4x32xf32>
    %221 = vector.extract_strided_slice %218 {offsets = [0, 64], sizes = [4, 32], strides = [1, 1]} : vector<4x96xf32> to vector<4x32xf32>
    %222 = vector.extract_strided_slice %212 {offsets = [0, 96], sizes = [4, 32], strides = [1, 1]} : vector<4x128xf32> to vector<4x32xf32>
    %223 = math.tanh %222 : vector<4x32xf32>
    %224 = arith.mulf %220, %191 : vector<4x32xf32>
    %225 = arith.mulf %219, %223 : vector<4x32xf32>
    %226 = arith.addf %224, %225 : vector<4x32xf32>
    %227 = math.tanh %226 : vector<4x32xf32>
    %228 = arith.mulf %221, %227 : vector<4x32xf32>
    %c4_i32_24 = arith.constant 4 : i32
    %229 = vector.broadcast %c4_i32_24 : i32 to vector<2x1xi32>
    %c3_i32_25 = arith.constant 3 : i32
    %230 = vector.broadcast %c3_i32_25 : i32 to vector<2x1xi32>
    %231 = tpu.concatenate %229, %230 in 0 : vector<2x1xi32>, vector<2x1xi32> -> vector<4x1xi32>
    %232 = arith.cmpi sgt, %1, %231 : vector<4x1xi32>
    %233 = vector.shape_cast %232 : vector<4x1xi1> to vector<4x1xi1>
    %234 = vector.broadcast %233 : vector<4x1xi1> to vector<4x32xi1>
    %235 = arith.select %234, %228, %188 : vector<4x32xi1>, vector<4x32xf32>
    %236 = vector.shape_cast %232 : vector<4x1xi1> to vector<4x1xi1>
    %237 = vector.broadcast %236 : vector<4x1xi1> to vector<4x32xi1>
    %238 = arith.select %237, %226, %191 : vector<4x32xi1>, vector<4x32xf32>
    %cst_26 = arith.constant 0.000000e+00 : f32
    %239 = vector.shape_cast %232 : vector<4x1xi1> to vector<4x1xi1>
    %240 = vector.broadcast %239 : vector<4x1xi1> to vector<4x32xi1>
    %241 = vector.broadcast %cst_26 : f32 to vector<4x32xf32>
    %242 = arith.select %240, %228, %241 : vector<4x32xi1>, vector<4x32xf32>
    %243 = vector.extract_strided_slice %242 {offsets = [0, 0], sizes = [2, 32], strides = [1, 1]} : vector<4x32xf32> to vector<2x32xf32>
    %244 = vector.extract_strided_slice %242 {offsets = [2, 0], sizes = [2, 32], strides = [1, 1]} : vector<4x32xf32> to vector<2x32xf32>
    %245 = arith.truncf %235 : vector<4x32xf32> to vector<4x32xbf16>
    %cst_27 = arith.constant dense<0.000000e+00> : vector<4x256xf32>
    %246 = tpu.matmul %245, %8, %cst_27 {dimension_numbers = #tpu.dot_dimension_numbers<[1], [0], [0], [1], [0, 0, 1, 1], [], []>} : vector<4x32xbf16>, vector<32x256xbf16>, vector<4x256xf32> -> vector<4x256xf32>
    %247 = vector.extract_strided_slice %7 {offsets = [5, 0], sizes = [1, 256], strides = [1, 1]} : vector<16x256xf32> to vector<1x256xf32>
    %248 = vector.extract_strided_slice %7 {offsets = [13, 0], sizes = [1, 256], strides = [1, 1]} : vector<16x256xf32> to vector<1x256xf32>
    %249 = tpu.concatenate %247, %248 in 0 : vector<1x256xf32>, vector<1x256xf32> -> vector<2x256xf32>
    %250 = vector.extract_strided_slice %249 {offsets = [0, 0], sizes = [2, 128], strides = [1, 1]} : vector<2x256xf32> to vector<2x128xf32>
    %251 = vector.extract_strided_slice %246 {offsets = [0, 0], sizes = [2, 128], strides = [1, 1]} : vector<4x256xf32> to vector<2x128xf32>
    %252 = arith.addf %250, %251 : vector<2x128xf32>
    %253 = vector.extract_strided_slice %7 {offsets = [2, 0], sizes = [1, 256], strides = [1, 1]} : vector<16x256xf32> to vector<1x256xf32>
    %254 = vector.extract_strided_slice %7 {offsets = [10, 0], sizes = [1, 256], strides = [1, 1]} : vector<16x256xf32> to vector<1x256xf32>
    %255 = tpu.concatenate %253, %254 in 0 : vector<1x256xf32>, vector<1x256xf32> -> vector<2x256xf32>
    %256 = vector.extract_strided_slice %255 {offsets = [0, 128], sizes = [2, 128], strides = [1, 1]} : vector<2x256xf32> to vector<2x128xf32>
    %257 = vector.extract_strided_slice %246 {offsets = [2, 128], sizes = [2, 128], strides = [1, 1]} : vector<4x256xf32> to vector<2x128xf32>
    %258 = arith.addf %256, %257 : vector<2x128xf32>
    %259 = tpu.concatenate %252, %258 in 0 : vector<2x128xf32>, vector<2x128xf32> -> vector<4x128xf32>
    %260 = vector.extract_strided_slice %259 {offsets = [0, 0], sizes = [4, 96], strides = [1, 1]} : vector<4x128xf32> to vector<4x96xf32>
    %261 = arith.negf %260 : vector<4x96xf32>
    %262 = math.exp %261 : vector<4x96xf32>
    %cst_28 = arith.constant 1.000000e+00 : f32
    %263 = vector.broadcast %cst_28 : f32 to vector<4x96xf32>
    %264 = arith.addf %263, %262 : vector<4x96xf32>
    %265 = arith.divf %263, %264 : vector<4x96xf32>
    %266 = vector.extract_strided_slice %265 {offsets = [0, 0], sizes = [4, 32], strides = [1, 1]} : vector<4x96xf32> to vector<4x32xf32>
    %267 = vector.extract_strided_slice %265 {offsets = [0, 32], sizes = [4, 32], strides = [1, 1]} : vector<4x96xf32> to vector<4x32xf32>
    %268 = vector.extract_strided_slice %265 {offsets = [0, 64], sizes = [4, 32], strides = [1, 1]} : vector<4x96xf32> to vector<4x32xf32>
    %269 = vector.extract_strided_slice %259 {offsets = [0, 96], sizes = [4, 32], strides = [1, 1]} : vector<4x128xf32> to vector<4x32xf32>
    %270 = math.tanh %269 : vector<4x32xf32>
    %271 = arith.mulf %267, %238 : vector<4x32xf32>
    %272 = arith.mulf %266, %270 : vector<4x32xf32>
    %273 = arith.addf %271, %272 : vector<4x32xf32>
    %274 = math.tanh %273 : vector<4x32xf32>
    %275 = arith.mulf %268, %274 : vector<4x32xf32>
    %c5_i32_29 = arith.constant 5 : i32
    %276 = vector.broadcast %c5_i32_29 : i32 to vector<2x1xi32>
    %c2_i32_30 = arith.constant 2 : i32
    %277 = vector.broadcast %c2_i32_30 : i32 to vector<2x1xi32>
    %278 = tpu.concatenate %276, %277 in 0 : vector<2x1xi32>, vector<2x1xi32> -> vector<4x1xi32>
    %279 = arith.cmpi sgt, %1, %278 : vector<4x1xi32>
    %280 = vector.shape_cast %279 : vector<4x1xi1> to vector<4x1xi1>
    %281 = vector.broadcast %280 : vector<4x1xi1> to vector<4x32xi1>
    %282 = arith.select %281, %275, %235 : vector<4x32xi1>, vector<4x32xf32>
    %283 = vector.shape_cast %279 : vector<4x1xi1> to vector<4x1xi1>
    %284 = vector.broadcast %283 : vector<4x1xi1> to vector<4x32xi1>
    %285 = arith.select %284, %273, %238 : vector<4x32xi1>, vector<4x32xf32>
    %cst_31 = arith.constant 0.000000e+00 : f32
    %286 = vector.shape_cast %279 : vector<4x1xi1> to vector<4x1xi1>
    %287 = vector.broadcast %286 : vector<4x1xi1> to vector<4x32xi1>
    %288 = vector.broadcast %cst_31 : f32 to vector<4x32xf32>
    %289 = arith.select %287, %275, %288 : vector<4x32xi1>, vector<4x32xf32>
    %290 = vector.extract_strided_slice %289 {offsets = [0, 0], sizes = [2, 32], strides = [1, 1]} : vector<4x32xf32> to vector<2x32xf32>
    %291 = vector.extract_strided_slice %289 {offsets = [2, 0], sizes = [2, 32], strides = [1, 1]} : vector<4x32xf32> to vector<2x32xf32>
    %292 = arith.truncf %282 : vector<4x32xf32> to vector<4x32xbf16>
    %cst_32 = arith.constant dense<0.000000e+00> : vector<4x256xf32>
    %293 = tpu.matmul %292, %8, %cst_32 {dimension_numbers = #tpu.dot_dimension_numbers<[1], [0], [0], [1], [0, 0, 1, 1], [], []>} : vector<4x32xbf16>, vector<32x256xbf16>, vector<4x256xf32> -> vector<4x256xf32>
    %294 = vector.extract_strided_slice %7 {offsets = [6, 0], sizes = [1, 256], strides = [1, 1]} : vector<16x256xf32> to vector<1x256xf32>
    %295 = vector.extract_strided_slice %7 {offsets = [14, 0], sizes = [1, 256], strides = [1, 1]} : vector<16x256xf32> to vector<1x256xf32>
    %296 = tpu.concatenate %294, %295 in 0 : vector<1x256xf32>, vector<1x256xf32> -> vector<2x256xf32>
    %297 = vector.extract_strided_slice %296 {offsets = [0, 0], sizes = [2, 128], strides = [1, 1]} : vector<2x256xf32> to vector<2x128xf32>
    %298 = vector.extract_strided_slice %293 {offsets = [0, 0], sizes = [2, 128], strides = [1, 1]} : vector<4x256xf32> to vector<2x128xf32>
    %299 = arith.addf %297, %298 : vector<2x128xf32>
    %300 = vector.extract_strided_slice %7 {offsets = [1, 0], sizes = [1, 256], strides = [1, 1]} : vector<16x256xf32> to vector<1x256xf32>
    %301 = vector.extract_strided_slice %7 {offsets = [9, 0], sizes = [1, 256], strides = [1, 1]} : vector<16x256xf32> to vector<1x256xf32>
    %302 = tpu.concatenate %300, %301 in 0 : vector<1x256xf32>, vector<1x256xf32> -> vector<2x256xf32>
    %303 = vector.extract_strided_slice %302 {offsets = [0, 128], sizes = [2, 128], strides = [1, 1]} : vector<2x256xf32> to vector<2x128xf32>
    %304 = vector.extract_strided_slice %293 {offsets = [2, 128], sizes = [2, 128], strides = [1, 1]} : vector<4x256xf32> to vector<2x128xf32>
    %305 = arith.addf %303, %304 : vector<2x128xf32>
    %306 = tpu.concatenate %299, %305 in 0 : vector<2x128xf32>, vector<2x128xf32> -> vector<4x128xf32>
    %307 = vector.extract_strided_slice %306 {offsets = [0, 0], sizes = [4, 96], strides = [1, 1]} : vector<4x128xf32> to vector<4x96xf32>
    %308 = arith.negf %307 : vector<4x96xf32>
    %309 = math.exp %308 : vector<4x96xf32>
    %cst_33 = arith.constant 1.000000e+00 : f32
    %310 = vector.broadcast %cst_33 : f32 to vector<4x96xf32>
    %311 = arith.addf %310, %309 : vector<4x96xf32>
    %312 = arith.divf %310, %311 : vector<4x96xf32>
    %313 = vector.extract_strided_slice %312 {offsets = [0, 0], sizes = [4, 32], strides = [1, 1]} : vector<4x96xf32> to vector<4x32xf32>
    %314 = vector.extract_strided_slice %312 {offsets = [0, 32], sizes = [4, 32], strides = [1, 1]} : vector<4x96xf32> to vector<4x32xf32>
    %315 = vector.extract_strided_slice %312 {offsets = [0, 64], sizes = [4, 32], strides = [1, 1]} : vector<4x96xf32> to vector<4x32xf32>
    %316 = vector.extract_strided_slice %306 {offsets = [0, 96], sizes = [4, 32], strides = [1, 1]} : vector<4x128xf32> to vector<4x32xf32>
    %317 = math.tanh %316 : vector<4x32xf32>
    %318 = arith.mulf %314, %285 : vector<4x32xf32>
    %319 = arith.mulf %313, %317 : vector<4x32xf32>
    %320 = arith.addf %318, %319 : vector<4x32xf32>
    %321 = math.tanh %320 : vector<4x32xf32>
    %322 = arith.mulf %315, %321 : vector<4x32xf32>
    %c6_i32_34 = arith.constant 6 : i32
    %323 = vector.broadcast %c6_i32_34 : i32 to vector<2x1xi32>
    %c1_i32_35 = arith.constant 1 : i32
    %324 = vector.broadcast %c1_i32_35 : i32 to vector<2x1xi32>
    %325 = tpu.concatenate %323, %324 in 0 : vector<2x1xi32>, vector<2x1xi32> -> vector<4x1xi32>
    %326 = arith.cmpi sgt, %1, %325 : vector<4x1xi32>
    %327 = vector.shape_cast %326 : vector<4x1xi1> to vector<4x1xi1>
    %328 = vector.broadcast %327 : vector<4x1xi1> to vector<4x32xi1>
    %329 = arith.select %328, %322, %282 : vector<4x32xi1>, vector<4x32xf32>
    %330 = vector.shape_cast %326 : vector<4x1xi1> to vector<4x1xi1>
    %331 = vector.broadcast %330 : vector<4x1xi1> to vector<4x32xi1>
    %332 = arith.select %331, %320, %285 : vector<4x32xi1>, vector<4x32xf32>
    %cst_36 = arith.constant 0.000000e+00 : f32
    %333 = vector.shape_cast %326 : vector<4x1xi1> to vector<4x1xi1>
    %334 = vector.broadcast %333 : vector<4x1xi1> to vector<4x32xi1>
    %335 = vector.broadcast %cst_36 : f32 to vector<4x32xf32>
    %336 = arith.select %334, %322, %335 : vector<4x32xi1>, vector<4x32xf32>
    %337 = vector.extract_strided_slice %336 {offsets = [0, 0], sizes = [2, 32], strides = [1, 1]} : vector<4x32xf32> to vector<2x32xf32>
    %338 = vector.extract_strided_slice %336 {offsets = [2, 0], sizes = [2, 32], strides = [1, 1]} : vector<4x32xf32> to vector<2x32xf32>
    %339 = arith.truncf %329 : vector<4x32xf32> to vector<4x32xbf16>
    %cst_37 = arith.constant dense<0.000000e+00> : vector<4x256xf32>
    %340 = tpu.matmul %339, %8, %cst_37 {dimension_numbers = #tpu.dot_dimension_numbers<[1], [0], [0], [1], [0, 0, 1, 1], [], []>} : vector<4x32xbf16>, vector<32x256xbf16>, vector<4x256xf32> -> vector<4x256xf32>
    %341 = vector.extract_strided_slice %7 {offsets = [7, 0], sizes = [1, 256], strides = [1, 1]} : vector<16x256xf32> to vector<1x256xf32>
    %342 = vector.extract_strided_slice %7 {offsets = [15, 0], sizes = [1, 256], strides = [1, 1]} : vector<16x256xf32> to vector<1x256xf32>
    %343 = tpu.concatenate %341, %342 in 0 : vector<1x256xf32>, vector<1x256xf32> -> vector<2x256xf32>
    %344 = vector.extract_strided_slice %343 {offsets = [0, 0], sizes = [2, 128], strides = [1, 1]} : vector<2x256xf32> to vector<2x128xf32>
    %345 = vector.extract_strided_slice %340 {offsets = [0, 0], sizes = [2, 128], strides = [1, 1]} : vector<4x256xf32> to vector<2x128xf32>
    %346 = arith.addf %344, %345 : vector<2x128xf32>
    %347 = vector.extract_strided_slice %7 {offsets = [0, 0], sizes = [1, 256], strides = [1, 1]} : vector<16x256xf32> to vector<1x256xf32>
    %348 = vector.extract_strided_slice %7 {offsets = [8, 0], sizes = [1, 256], strides = [1, 1]} : vector<16x256xf32> to vector<1x256xf32>
    %349 = tpu.concatenate %347, %348 in 0 : vector<1x256xf32>, vector<1x256xf32> -> vector<2x256xf32>
    %350 = vector.extract_strided_slice %349 {offsets = [0, 128], sizes = [2, 128], strides = [1, 1]} : vector<2x256xf32> to vector<2x128xf32>
    %351 = vector.extract_strided_slice %340 {offsets = [2, 128], sizes = [2, 128], strides = [1, 1]} : vector<4x256xf32> to vector<2x128xf32>
    %352 = arith.addf %350, %351 : vector<2x128xf32>
    %353 = tpu.concatenate %346, %352 in 0 : vector<2x128xf32>, vector<2x128xf32> -> vector<4x128xf32>
    %354 = vector.extract_strided_slice %353 {offsets = [0, 0], sizes = [4, 96], strides = [1, 1]} : vector<4x128xf32> to vector<4x96xf32>
    %355 = arith.negf %354 : vector<4x96xf32>
    %356 = math.exp %355 : vector<4x96xf32>
    %cst_38 = arith.constant 1.000000e+00 : f32
    %357 = vector.broadcast %cst_38 : f32 to vector<4x96xf32>
    %358 = arith.addf %357, %356 : vector<4x96xf32>
    %359 = arith.divf %357, %358 : vector<4x96xf32>
    %360 = vector.extract_strided_slice %359 {offsets = [0, 0], sizes = [4, 32], strides = [1, 1]} : vector<4x96xf32> to vector<4x32xf32>
    %361 = vector.extract_strided_slice %359 {offsets = [0, 32], sizes = [4, 32], strides = [1, 1]} : vector<4x96xf32> to vector<4x32xf32>
    %362 = vector.extract_strided_slice %359 {offsets = [0, 64], sizes = [4, 32], strides = [1, 1]} : vector<4x96xf32> to vector<4x32xf32>
    %363 = vector.extract_strided_slice %353 {offsets = [0, 96], sizes = [4, 32], strides = [1, 1]} : vector<4x128xf32> to vector<4x32xf32>
    %364 = math.tanh %363 : vector<4x32xf32>
    %365 = arith.mulf %361, %332 : vector<4x32xf32>
    %366 = arith.mulf %360, %364 : vector<4x32xf32>
    %367 = arith.addf %365, %366 : vector<4x32xf32>
    %368 = math.tanh %367 : vector<4x32xf32>
    %369 = arith.mulf %362, %368 : vector<4x32xf32>
    %c7_i32_39 = arith.constant 7 : i32
    %370 = vector.broadcast %c7_i32_39 : i32 to vector<2x1xi32>
    %c0_i32_40 = arith.constant 0 : i32
    %371 = vector.broadcast %c0_i32_40 : i32 to vector<2x1xi32>
    %372 = tpu.concatenate %370, %371 in 0 : vector<2x1xi32>, vector<2x1xi32> -> vector<4x1xi32>
    %373 = arith.cmpi sgt, %1, %372 : vector<4x1xi32>
    %cst_41 = arith.constant 0.000000e+00 : f32
    %374 = vector.shape_cast %373 : vector<4x1xi1> to vector<4x1xi1>
    %375 = vector.broadcast %374 : vector<4x1xi1> to vector<4x32xi1>
    %376 = vector.broadcast %cst_41 : f32 to vector<4x32xf32>
    %377 = arith.select %375, %369, %376 : vector<4x32xi1>, vector<4x32xf32>
    %378 = vector.extract_strided_slice %377 {offsets = [0, 0], sizes = [2, 32], strides = [1, 1]} : vector<4x32xf32> to vector<2x32xf32>
    %379 = vector.extract_strided_slice %377 {offsets = [2, 0], sizes = [2, 32], strides = [1, 1]} : vector<4x32xf32> to vector<2x32xf32>
    %380 = arith.addf %55, %379 : vector<2x32xf32>
    %381 = arith.addf %102, %338 : vector<2x32xf32>
    %382 = arith.addf %149, %291 : vector<2x32xf32>
    %383 = arith.addf %196, %244 : vector<2x32xf32>
    %384 = arith.addf %243, %197 : vector<2x32xf32>
    %385 = arith.addf %290, %150 : vector<2x32xf32>
    %386 = arith.addf %337, %103 : vector<2x32xf32>
    %387 = arith.addf %378, %56 : vector<2x32xf32>
    %388 = vector.extract_strided_slice %380 {offsets = [0, 0], sizes = [1, 32], strides = [1, 1]} : vector<2x32xf32> to vector<1x32xf32>
    %389 = vector.extract_strided_slice %381 {offsets = [0, 0], sizes = [1, 32], strides = [1, 1]} : vector<2x32xf32> to vector<1x32xf32>
    %390 = vector.extract_strided_slice %382 {offsets = [0, 0], sizes = [1, 32], strides = [1, 1]} : vector<2x32xf32> to vector<1x32xf32>
    %391 = vector.extract_strided_slice %383 {offsets = [0, 0], sizes = [1, 32], strides = [1, 1]} : vector<2x32xf32> to vector<1x32xf32>
    %392 = vector.extract_strided_slice %384 {offsets = [0, 0], sizes = [1, 32], strides = [1, 1]} : vector<2x32xf32> to vector<1x32xf32>
    %393 = vector.extract_strided_slice %385 {offsets = [0, 0], sizes = [1, 32], strides = [1, 1]} : vector<2x32xf32> to vector<1x32xf32>
    %394 = vector.extract_strided_slice %386 {offsets = [0, 0], sizes = [1, 32], strides = [1, 1]} : vector<2x32xf32> to vector<1x32xf32>
    %395 = vector.extract_strided_slice %387 {offsets = [0, 0], sizes = [1, 32], strides = [1, 1]} : vector<2x32xf32> to vector<1x32xf32>
    %396 = vector.extract_strided_slice %380 {offsets = [1, 0], sizes = [1, 32], strides = [1, 1]} : vector<2x32xf32> to vector<1x32xf32>
    %397 = vector.extract_strided_slice %381 {offsets = [1, 0], sizes = [1, 32], strides = [1, 1]} : vector<2x32xf32> to vector<1x32xf32>
    %398 = vector.extract_strided_slice %382 {offsets = [1, 0], sizes = [1, 32], strides = [1, 1]} : vector<2x32xf32> to vector<1x32xf32>
    %399 = vector.extract_strided_slice %383 {offsets = [1, 0], sizes = [1, 32], strides = [1, 1]} : vector<2x32xf32> to vector<1x32xf32>
    %400 = vector.extract_strided_slice %384 {offsets = [1, 0], sizes = [1, 32], strides = [1, 1]} : vector<2x32xf32> to vector<1x32xf32>
    %401 = vector.extract_strided_slice %385 {offsets = [1, 0], sizes = [1, 32], strides = [1, 1]} : vector<2x32xf32> to vector<1x32xf32>
    %402 = vector.extract_strided_slice %386 {offsets = [1, 0], sizes = [1, 32], strides = [1, 1]} : vector<2x32xf32> to vector<1x32xf32>
    %403 = vector.extract_strided_slice %387 {offsets = [1, 0], sizes = [1, 32], strides = [1, 1]} : vector<2x32xf32> to vector<1x32xf32>
    %404 = tpu.concatenate %388, %389, %390, %391, %392, %393, %394, %395, %396, %397, %398, %399, %400, %401, %402, %403 in 0 : vector<1x32xf32>, vector<1x32xf32>, vector<1x32xf32>, vector<1x32xf32>, vector<1x32xf32>, vector<1x32xf32>, vector<1x32xf32>, vector<1x32xf32>, vector<1x32xf32>, vector<1x32xf32>, vector<1x32xf32>, vector<1x32xf32>, vector<1x32xf32>, vector<1x32xf32>, vector<1x32xf32>, vector<1x32xf32> -> vector<16x32xf32>
    %405 = arith.truncf %404 : vector<16x32xf32> to vector<16x32xbf16>
    %c0_42 = arith.constant 0 : index
    %c0_43 = arith.constant 0 : index
    %406 = vector.load %arg5[%c0_42, %c0_43] : memref<32x96xbf16, #tpu.memory_space<vmem>>, vector<32x96xbf16>
    %cst_44 = arith.constant dense<0.000000e+00> : vector<16x96xf32>
    %407 = tpu.matmul %405, %406, %cst_44 {dimension_numbers = #tpu.dot_dimension_numbers<[1], [0], [0], [1], [0, 0, 1, 1], [], []>} : vector<16x32xbf16>, vector<32x96xbf16>, vector<16x96xf32> -> vector<16x96xf32>
    %408 = tpu.iota {dimensions = array<i32: 1>} : vector<1x8xi32>
    %409 = vector.broadcast %408 : vector<1x8xi32> to vector<2x8xi32>
    %410 = vector.broadcast %0 : vector<2x1xi32> to vector<2x8xi32>
    %411 = arith.cmpi slt, %409, %410 : vector<2x8xi32>
    %412 = arith.extui %411 : vector<2x8xi1> to vector<2x8xi32>
    %413 = arith.sitofp %412 : vector<2x8xi32> to vector<2x8xf32>
    %cst_45 = arith.constant 1.000000e+00 : f32
    %414 = vector.broadcast %cst_45 : f32 to vector<2x8xf32>
    %415 = arith.subf %414, %413 : vector<2x8xf32>
    %cst_46 = arith.constant -1.000000e+05 : f32
    %416 = vector.broadcast %cst_46 : f32 to vector<2x8xf32>
    %417 = arith.mulf %415, %416 : vector<2x8xf32>
    %418 = vector.extract_strided_slice %407 {offsets = [0, 0], sizes = [8, 96], strides = [1, 1]} : vector<16x96xf32> to vector<8x96xf32>
    %419 = vector.extract_strided_slice %418 {offsets = [0, 0], sizes = [8, 32], strides = [1, 1]} : vector<8x96xf32> to vector<8x32xf32>
    %420 = vector.extract_strided_slice %418 {offsets = [0, 32], sizes = [8, 32], strides = [1, 1]} : vector<8x96xf32> to vector<8x32xf32>
    %421 = vector.extract_strided_slice %418 {offsets = [0, 64], sizes = [8, 32], strides = [1, 1]} : vector<8x96xf32> to vector<8x32xf32>
    %cst_47 = arith.constant dense<0.000000e+00> : vector<8x8xf32>
    %422 = tpu.matmul %419, %420, %cst_47 {dimension_numbers = #tpu.dot_dimension_numbers<[1], [1], [0], [0], [0, 0, 1, 0], [], []>} : vector<8x32xf32>, vector<8x32xf32>, vector<8x8xf32> -> vector<8x8xf32>
    %cst_48 = arith.constant 0.176776692 : f32
    %423 = vector.broadcast %cst_48 : f32 to vector<8x8xf32>
    %424 = arith.mulf %422, %423 : vector<8x8xf32>
    %425 = vector.extract_strided_slice %417 {offsets = [0, 0], sizes = [1, 8], strides = [1, 1]} : vector<2x8xf32> to vector<1x8xf32>
    %426 = vector.broadcast %425 : vector<1x8xf32> to vector<8x8xf32>
    %427 = arith.addf %424, %426 : vector<8x8xf32>
    %cst_49 = arith.constant dense<0xFF800000> : vector<8xf32>
    %428 = vector.multi_reduction <maximumf>, %427, %cst_49 [1] : vector<8x8xf32> to vector<8xf32>
    %429 = vector.shape_cast %428 : vector<8xf32> to vector<8x1xf32>
    %430 = vector.broadcast %429 : vector<8x1xf32> to vector<8x8xf32>
    %431 = arith.subf %427, %430 : vector<8x8xf32>
    %432 = math.exp %431 : vector<8x8xf32>
    %cst_50 = arith.constant dense<0.000000e+00> : vector<8xf32>
    %433 = vector.multi_reduction <add>, %432, %cst_50 [1] : vector<8x8xf32> to vector<8xf32>
    %434 = vector.shape_cast %433 : vector<8xf32> to vector<8x1xf32>
    %435 = tpu.reciprocal %434 {approx = true} : vector<8x1xf32> -> vector<8x1xf32>
    %436 = vector.broadcast %435 : vector<8x1xf32> to vector<8x8xf32>
    %437 = arith.mulf %432, %436 : vector<8x8xf32>
    %cst_51 = arith.constant dense<0.000000e+00> : vector<8x32xf32>
    %438 = tpu.matmul %437, %421, %cst_51 {dimension_numbers = #tpu.dot_dimension_numbers<[1], [0], [0], [1], [0, 0, 1, 1], [], []>} : vector<8x8xf32>, vector<8x32xf32>, vector<8x32xf32> -> vector<8x32xf32>
    %cst_52 = arith.constant dense<0.000000e+00> : vector<32xf32>
    %439 = vector.multi_reduction <add>, %438, %cst_52 [0] : vector<8x32xf32> to vector<32xf32>
    %440 = vector.shape_cast %439 : vector<32xf32> to vector<1x32xf32>
    %441 = vector.extract_strided_slice %407 {offsets = [8, 0], sizes = [8, 96], strides = [1, 1]} : vector<16x96xf32> to vector<8x96xf32>
    %442 = vector.extract_strided_slice %441 {offsets = [0, 0], sizes = [8, 32], strides = [1, 1]} : vector<8x96xf32> to vector<8x32xf32>
    %443 = vector.extract_strided_slice %441 {offsets = [0, 32], sizes = [8, 32], strides = [1, 1]} : vector<8x96xf32> to vector<8x32xf32>
    %444 = vector.extract_strided_slice %441 {offsets = [0, 64], sizes = [8, 32], strides = [1, 1]} : vector<8x96xf32> to vector<8x32xf32>
    %cst_53 = arith.constant dense<0.000000e+00> : vector<8x8xf32>
    %445 = tpu.matmul %442, %443, %cst_53 {dimension_numbers = #tpu.dot_dimension_numbers<[1], [1], [0], [0], [0, 0, 1, 0], [], []>} : vector<8x32xf32>, vector<8x32xf32>, vector<8x8xf32> -> vector<8x8xf32>
    %cst_54 = arith.constant 0.176776692 : f32
    %446 = vector.broadcast %cst_54 : f32 to vector<8x8xf32>
    %447 = arith.mulf %445, %446 : vector<8x8xf32>
    %448 = vector.extract_strided_slice %417 {offsets = [1, 0], sizes = [1, 8], strides = [1, 1]} : vector<2x8xf32> to vector<1x8xf32>
    %449 = vector.broadcast %448 : vector<1x8xf32> to vector<8x8xf32>
    %450 = arith.addf %447, %449 : vector<8x8xf32>
    %cst_55 = arith.constant dense<0xFF800000> : vector<8xf32>
    %451 = vector.multi_reduction <maximumf>, %450, %cst_55 [1] : vector<8x8xf32> to vector<8xf32>
    %452 = vector.shape_cast %451 : vector<8xf32> to vector<8x1xf32>
    %453 = vector.broadcast %452 : vector<8x1xf32> to vector<8x8xf32>
    %454 = arith.subf %450, %453 : vector<8x8xf32>
    %455 = math.exp %454 : vector<8x8xf32>
    %cst_56 = arith.constant dense<0.000000e+00> : vector<8xf32>
    %456 = vector.multi_reduction <add>, %455, %cst_56 [1] : vector<8x8xf32> to vector<8xf32>
    %457 = vector.shape_cast %456 : vector<8xf32> to vector<8x1xf32>
    %458 = tpu.reciprocal %457 {approx = true} : vector<8x1xf32> -> vector<8x1xf32>
    %459 = vector.broadcast %458 : vector<8x1xf32> to vector<8x8xf32>
    %460 = arith.mulf %455, %459 : vector<8x8xf32>
    %cst_57 = arith.constant dense<0.000000e+00> : vector<8x32xf32>
    %461 = tpu.matmul %460, %444, %cst_57 {dimension_numbers = #tpu.dot_dimension_numbers<[1], [0], [0], [1], [0, 0, 1, 1], [], []>} : vector<8x8xf32>, vector<8x32xf32>, vector<8x32xf32> -> vector<8x32xf32>
    %cst_58 = arith.constant dense<0.000000e+00> : vector<32xf32>
    %462 = vector.multi_reduction <add>, %461, %cst_58 [0] : vector<8x32xf32> to vector<32xf32>
    %463 = vector.shape_cast %462 : vector<32xf32> to vector<1x32xf32>
    %464 = tpu.concatenate %440, %463 in 0 : vector<1x32xf32>, vector<1x32xf32> -> vector<2x32xf32>
    %c0_59 = arith.constant 0 : index
    %c0_60 = arith.constant 0 : index
    %465 = vector.load %arg6[%c0_59, %c0_60] : memref<2x32xf32, #tpu.memory_space<vmem>>, vector<2x32xf32>
    tpu.vector_store %arg6[%c0_59, %c0_60], %464 {strides = array<i32>} : memref<2x32xf32, #tpu.memory_space<vmem>>, vector<2x32xf32>,
    return
  }
}

</mosaic_0001>

<llo_original>
// kernel: tpu_custom_call.1
$region0: #{tpu_custom_call.1}
  #allocation0 [shape = 'u32[]', space=smem, size = 0x4, offset = 0x4, fixed_abs, tag = 'smem constant byte address 0x4 - core index']
  #allocation1 [shape = 'u32[144,128]{1,0:T(1,128)}', space=vmem, size = 0x12000, scoped, tag = 'internal scratch']
  %s0 = inlined_call_operand.vmem [shape: s32[2,1], index: 0, kind: input, shape index: {}]
  %s1 = inlined_call_operand.hbm [shape: bf16[16,32], index: 1, kind: input, shape index: {}]
  %s2 = inlined_call_operand.hbm [shape: bf16[32,256], index: 2, kind: input, shape index: {}]
  %s3 = inlined_call_operand.vmem [shape: f32[1,256], index: 3, kind: input, shape index: {}]
  %s4 = inlined_call_operand.hbm [shape: bf16[32,256], index: 4, kind: input, shape index: {}]
  %s5 = inlined_call_operand.vmem [shape: bf16[32,96], index: 5, kind: input, shape index: {}]
  %s6 = inlined_call_operand.hbm [shape: f32[2,32], index: 6, kind: output, shape index: {}]
  %s7 = sld [smem:[#allocation0]]
  $region46: #{tpu_custom_call.1} parent=0
    _
  %s9 = ssub.s32 1, %s7
  %s10 = scalar_select 0, %s9, %s7
  $region1: #{tpu_custom_call.1} parent=0
    #allocation2 [shape = 'u8[4096]{0}', space=vmem, size = 0x1000, scoped, tag = 'input window, operand 1, single buffered']
    #allocation3 [shape = 's32[1]{0}', space=sflag, size = 0x4, scoped, tag = 'scoped memory for tpu_custom_call.1']
    #allocation4 [shape = 's32[1]{0}', space=sflag, size = 0x4, scoped, tag = 'scoped memory for tpu_custom_call.1']
    #allocation5 [shape = 'u8[16384]{0}', space=vmem, size = 0x4000, scoped, tag = 'input window, operand 2, single buffered']
    #allocation6 [shape = 's32[1]{0}', space=sflag, size = 0x4, scoped, tag = 'scoped memory for tpu_custom_call.1']
    #allocation7 [shape = 'u8[16384]{0}', space=vmem, size = 0x4000, scoped, tag = 'input window, operand 4, single buffered']
    #allocation8 [shape = 'u8[1024]{0}', space=vmem, size = 0x400, scoped, tag = 'output window, operand 0, single buffered']
    %11 = vsyncpa [#allocation3], 0
    %12 = vsyncpa [#allocation6], 0
    %13 = vsyncpa [#allocation4], 0
    // Predicated region
    $region2: #{tpu_custom_call.1} parent=1 // pred_check
      _
    $region3: #{tpu_custom_call.1} parent=1 // pred_check_branch
      %15 = sbr.rel (0) target = $region5
    $region4: #{tpu_custom_call.1} parent=1 // pred_region
      _
    $region5: #{tpu_custom_call.1} parent=1 // pred_fallthru
      _
    // Predicated region
    $region6: #{tpu_custom_call.1} parent=1 // pred_check
      _
    $region7: #{tpu_custom_call.1} parent=1 // pred_check_branch
      %17 = sbr.rel (0) target = $region9
    $region8: #{tpu_custom_call.1} parent=1 // pred_region
      %s19 = ssub.s32 128, 128
      %20 = vsyncadd [#allocation3], %s19
      %s21 = sshll.u32 [#allocation2], 4
      %s22 = int_to_ptr.vmem [resolvable:$true] %s21
      %27 = dma.hbm_to_vmem [thread:$0]  %s1, 128, %s22, [#allocation3], 64, 64, 4
    $region9: #{tpu_custom_call.1} parent=1 // pred_fallthru
      _
    // Predicated region
    $region10: #{tpu_custom_call.1} parent=1 // pred_check
      _
    $region11: #{tpu_custom_call.1} parent=1 // pred_check_branch
      %29 = sbr.rel (0) target = $region13
    $region12: #{tpu_custom_call.1} parent=1 // pred_region
      %s31 = ssub.s32 512, 512
      %32 = vsyncadd [#allocation6], %s31
      %s33 = sshll.u32 [#allocation5], 4
      %s34 = int_to_ptr.vmem [resolvable:$true] %s33
      %39 = dma.hbm_to_vmem [thread:$0]  %s2, 512, %s34, [#allocation6], 128, 128, 8
    $region13: #{tpu_custom_call.1} parent=1 // pred_fallthru
      _
    // Predicated region
    $region14: #{tpu_custom_call.1} parent=1 // pred_check
      _
    $region15: #{tpu_custom_call.1} parent=1 // pred_check_branch
      %41 = sbr.rel (0) target = $region17
    $region16: #{tpu_custom_call.1} parent=1 // pred_region
      _
    $region17: #{tpu_custom_call.1} parent=1 // pred_fallthru
      _
    // Predicated region
    $region18: #{tpu_custom_call.1} parent=1 // pred_check
      _
    $region19: #{tpu_custom_call.1} parent=1 // pred_check_branch
      %43 = sbr.rel (0) target = $region21
    $region20: #{tpu_custom_call.1} parent=1 // pred_region
      %s45 = ssub.s32 512, 512
      %46 = vsyncadd [#allocation6], %s45
      %s47 = sshll.u32 [#allocation7], 4
      %s48 = int_to_ptr.vmem [resolvable:$true] %s47
      %53 = dma.hbm_to_vmem [thread:$0]  %s4, 512, %s48, [#allocation6], 128, 128, 8
    $region21: #{tpu_custom_call.1} parent=1 // pred_fallthru
      _
    // Predicated region
    $region22: #{tpu_custom_call.1} parent=1 // pred_check
      _
    $region23: #{tpu_custom_call.1} parent=1 // pred_check_branch
      %55 = sbr.rel (0) target = $region25
    $region24: #{tpu_custom_call.1} parent=1 // pred_region
      _
    $region25: #{tpu_custom_call.1} parent=1 // pred_fallthru
      _
    // Predicated region
    $region26: #{tpu_custom_call.1} parent=1 // pred_check
      _
    $region27: #{tpu_custom_call.1} parent=1 // pred_check_branch
      %57 = sbr.rel (0) target = $region29
    $region28: #{tpu_custom_call.1} parent=1 // pred_region
      %58 = dma.done [#allocation3], 128
    $region29: #{tpu_custom_call.1} parent=1 // pred_fallthru
      _
    // Predicated region
    $region30: #{tpu_custom_call.1} parent=1 // pred_check
      _
    $region31: #{tpu_custom_call.1} parent=1 // pred_check_branch
      %60 = sbr.rel (0) target = $region33
    $region32: #{tpu_custom_call.1} parent=1 // pred_region
      %61 = dma.done [#allocation6], 512
    $region33: #{tpu_custom_call.1} parent=1 // pred_fallthru
      _
    // Predicated region
    $region34: #{tpu_custom_call.1} parent=1 // pred_check
      _
    $region35: #{tpu_custom_call.1} parent=1 // pred_check_branch
      %63 = sbr.rel (0) target = $region37
    $region36: #{tpu_custom_call.1} parent=1 // pred_region
      %64 = dma.done [#allocation6], 512
    $region37: #{tpu_custom_call.1} parent=1 // pred_fallthru
      _
    %v66 = vld [vmem:[%s0] sm:$0x3]
    %v67 = vrot.slane %v66, 6
    %vm68 = vcmask 1041408
    %v69 = vsel %vm68, %v66, %v67
    %v70 = vld [vmem:[#allocation2] sm:$0xf]
    %v71 = vld [vmem:[#allocation2 + $0x4] sm:$0xf]
    %v72 = vld [vmem:[#allocation5] sm:$0xff]
    %v73 = vld [vmem:[#allocation5 + $0x8] sm:$0xff]
    %v74 = vld [vmem:[#allocation5 + $0x10] sm:$0xff]
    %v75 = vld [vmem:[#allocation5 + $0x18] sm:$0xff]
    %v76 = vld [vmem:[%s3] sm:$0x3]
    %v78 = vlaneseq
    %v79 = vshrl.u32 %v78, 7
    %v80 = vsub.s32 0, %v79
    %v81 = vrot.slane %v76, %v80
    %v82 = vlaneseq
    %v83 = vshrl.u32 %v82, 7
    %v84 = vsub.s32 1, %v83
    %v85 = vrot.slane %v76, %v84
    %v90 = vunpack.c.l.b16 %v70
    %v91 = vunpack.c.l.b16 %v71
    %v92 = vpack.c.b16 %v91, %v90
    %v97 = vunpack.c.l.b16 %v72
    %v98 = vunpack.c.h.b16 %v72
    %v99 = vunpack.c.l.b16 %v73
    %v100 = vunpack.c.h.b16 %v73
    %v101 = vunpack.c.l.b16 %v74
    %v102 = vunpack.c.h.b16 %v74
    %v103 = vunpack.c.l.b16 %v75
    %v104 = vunpack.c.h.b16 %v75
    %v105 = vpack.c.b16 %v99, %v97
    %v106 = vpack.c.b16 %v100, %v98
    %v107 = vpack.c.b16 %v103, %v101
    %v108 = vpack.c.b16 %v104, %v102
    %vm113 = vcmask 261120
    %v115 = vsel %vm113, %v92, 0
    %117 = vmatprep.subr.bf16.mxu0 %v106
    %118 = vmatpush1.bf16.msra.mxu0 %v105
    %119 = vmatprep.subr.bf16.mxu0 %v108
    %120 = vmatpush1.bf16.msra.mxu0 %v107
    %121 = vmatprep.subr.bf16.mxu0 0
    %122 = vmatpush1.bf16.msra.mxu0 0
    %123 = vmatprep.subr.bf16.mxu0 0
    %124 = vmatpush1.bf16.msra.mxu0 0
    %125 = vmatprep.subr.bf16.mxu0 0
    %126 = vmatpush1.bf16.msra.mxu0 0
    %127 = vmatprep.subr.bf16.mxu0 0
    %128 = vmatpush1.bf16.msra.mxu0 0
    %129 = vmatprep.subr.bf16.mxu0 0
    %130 = vmatpush1.bf16.msra.mxu0 0
    %131 = vmatprep.subr.bf16.mxu0 0
    %132 = vmatpush1.bf16.msra.mxu0 0
    %133 = vmatprep.subr.bf16.mxu0 0
    %134 = vmatpush1.bf16.msra.mxu0 0
    %135 = vmatprep.subr.bf16.mxu0 0
    %136 = vmatpush1.bf16.msra.mxu0 0
    %137 = vmatprep.subr.bf16.mxu0 0
    %138 = vmatpush1.bf16.msra.mxu0 0
    %139 = vmatprep.subr.bf16.mxu0 0
    %140 = vmatpush1.bf16.msra.mxu0 0
    %141 = vmatprep.subr.bf16.mxu0 0
    %142 = vmatpush1.bf16.msra.mxu0 0
    %143 = vmatprep.subr.bf16.mxu0 0
    %144 = vmatpush1.bf16.msra.mxu0 0
    %145 = vmatprep.subr.bf16.mxu0 0
    %146 = vmatpush1.bf16.msra.mxu0 0
    %147 = vmatprep.subr.bf16.mxu0 0
    %148 = vmatpush1.bf16.msra.mxu0 0
    %149 = vmatprep.mubr.bf16.mxu0 0
    %150 = vmatmul.mubr.bf16.gmra.mrb[0].mxu0 %v115
    %v151 = vpop.f32.mrb[0].mxu0
    %v152 = vadd.f32 %v81, %v151
    %v153 = vpop.f32.mrb[0].mxu0
    %v154 = vadd.f32 %v85, %v153
    %v155 = vpop.f32.mrb[0].mxu0
    %v156 = vadd.f32 %v81, %v155
    %v157 = vpop.f32.mrb[0].mxu0
    %v158 = vadd.f32 %v85, %v157
    %159 = vdwg.mxu0
    %v160 = vld [vmem:[#allocation7] sm:$0xff]
    %v161 = vld [vmem:[#allocation7 + $0x8] sm:$0xff]
    %v162 = vld [vmem:[#allocation7 + $0x10] sm:$0xff]
    %v163 = vld [vmem:[#allocation7 + $0x18] sm:$0xff]
    %v168 = vunpack.c.l.b16 %v160
    %v169 = vunpack.c.h.b16 %v160
    %v170 = vunpack.c.l.b16 %v161
    %v171 = vunpack.c.h.b16 %v161
    %v172 = vunpack.c.l.b16 %v162
    %v173 = vunpack.c.h.b16 %v162
    %v174 = vunpack.c.l.b16 %v163
    %v175 = vunpack.c.h.b16 %v163
    %v176 = vpack.c.b16 %v170, %v168
    %v177 = vpack.c.b16 %v171, %v169
    %v178 = vpack.c.b16 %v174, %v172
    %v179 = vpack.c.b16 %v175, %v173
    %v185 = vsel %vm113, 0, 0
    %187 = vmatprep.subr.bf16.mxu0 %v177
    %188 = vmatpush1.bf16.msra.mxu0 %v176
    %189 = vmatprep.subr.bf16.mxu0 %v179
    %190 = vmatpush1.bf16.msra.mxu0 %v178
    %191 = vmatprep.subr.bf16.mxu0 0
    %192 = vmatpush1.bf16.msra.mxu0 0
    %193 = vmatprep.subr.bf16.mxu0 0
    %194 = vmatpush1.bf16.msra.mxu0 0
    %195 = vmatprep.subr.bf16.mxu0 0
    %196 = vmatpush1.bf16.msra.mxu0 0
    %197 = vmatprep.subr.bf16.mxu0 0
    %198 = vmatpush1.bf16.msra.mxu0 0
    %199 = vmatprep.subr.bf16.mxu0 0
    %200 = vmatpush1.bf16.msra.mxu0 0
    %201 = vmatprep.subr.bf16.mxu0 0
    %202 = vmatpush1.bf16.msra.mxu0 0
    %203 = vmatprep.subr.bf16.mxu0 0
    %204 = vmatpush1.bf16.msra.mxu0 0
    %205 = vmatprep.subr.bf16.mxu0 0
    %206 = vmatpush1.bf16.msra.mxu0 0
    %207 = vmatprep.subr.bf16.mxu0 0
    %208 = vmatpush1.bf16.msra.mxu0 0
    %209 = vmatprep.subr.bf16.mxu0 0
    %210 = vmatpush1.bf16.msra.mxu0 0
    %211 = vmatprep.subr.bf16.mxu0 0
    %212 = vmatpush1.bf16.msra.mxu0 0
    %213 = vmatprep.subr.bf16.mxu0 0
    %214 = vmatpush1.bf16.msra.mxu0 0
    %215 = vmatprep.subr.bf16.mxu0 0
    %216 = vmatpush1.bf16.msra.mxu0 0
    %217 = vmatprep.subr.bf16.mxu0 0
    %218 = vmatpush1.bf16.msra.mxu0 0
    %219 = vmatprep.mubr.bf16.mxu0 0
    %220 = vmatmul.mubr.bf16.gmra.mrb[0].mxu0 %v185
    %v221 = vpop.f32.mrb[0].mxu0
    %v222 = vadd.f32 0.0, %v221
    %v223 = vpop.f32.mrb[0].mxu0
    %v224 = vadd.f32 0.0, %v223
    %v225 = vpop.f32.mrb[0].mxu0
    %v226 = vpop.f32.mrb[0].mxu0
    %227 = vdwg.mxu0
    %v230 = vrot.slane %v156, 7
    %v231 = vrot.slane %v158, 7
    %vm234 = vcmask 1040384
    %v235 = vsel %vm234, %v152, %v230
    %v236 = vsel %vm234, %v154, %v231
    %v237 = vadd.f32 %v235, %v222
    %v240 = vrot.slane %v152, 7
    %v241 = vrot.slane %v154, 7
    %v244 = vrot.slane %v156, 6
    %v245 = vrot.slane %v158, 6
    %v248 = vsel %vm234, %v240, %v244
    %v249 = vsel %vm234, %v241, %v245
    %v251 = vrot.slane %v224, 2
    %v253 = vadd.f32 %v249, %v251
    %v255 = vrot.slane %v253, 6
    %v257 = vsel %vm68, %v237, %v255
    %v258 = vxor.u32 %v257, 2147483648
    %v259 = vmul.f32 %v258, 1.442695
    %v260 = vpow.pop %v259
    %v261 = vadd.f32 %v260, 1.0
    %v262 = vrcp.pop %v261
    %v263 = vmul.f32 1.0, %v262
    %v264 = vtanh.pop %v257
    %v265 = vmul.f32 %v263, 0.0
    %267 = vrot.lane.b32.xlu0 %v264, 32
    %v268 = vpop.permute.xlu0 %267
    %v270 = vmul.f32 %v263, %v268
    %272 = vrot.lane.b32.xlu0 %v270, 32
    %v273 = vpop.permute.xlu0 %272
    %v275 = vadd.f32 %v265, %v273
    %v276 = vtanh.pop %v275
    %278 = vrot.lane.b32.xlu0 %v276, 32
    %v279 = vpop.permute.xlu0 %278
    %v281 = vmul.f32 %v263, %v279
    %v282 = vsel %vm68, 0, 7
    %vm283 = vcmp.gt.s32.totalorder %v69, %v282
    %v284 = vsel %vm283, 1, 0
    %285 = vset.pattern.permute.xlu0 0
    %286 = vperm.xlu0 %285, %v284
    %v287 = vpop.permute.xlu0 %286
    %vm288 = vcmp.eq.s32.totalorder %v287, 1
    %v289 = vsel %vm288, %v281, 0.0
    %v290 = vsel %vm288, %v275, 0.0
    %v291 = vpack.c.bf16 %v289, %v289
    %293 = vrot.lane.b32.xlu0 %v291, 64
    %v294 = vpop.permute.xlu0 %293
    %v296 = vsel %vm113, %v294, 0
    %298 = vmatprep.subr.bf16.mxu0 %v177
    %299 = vmatpush1.bf16.msra.mxu0 %v176
    %300 = vmatprep.subr.bf16.mxu0 %v179
    %301 = vmatpush1.bf16.msra.mxu0 %v178
    %302 = vmatprep.subr.bf16.mxu0 0
    %303 = vmatpush1.bf16.msra.mxu0 0
    %304 = vmatprep.subr.bf16.mxu0 0
    %305 = vmatpush1.bf16.msra.mxu0 0
    %306 = vmatprep.subr.bf16.mxu0 0
    %307 = vmatpush1.bf16.msra.mxu0 0
    %308 = vmatprep.subr.bf16.mxu0 0
    %309 = vmatpush1.bf16.msra.mxu0 0
    %310 = vmatprep.subr.bf16.mxu0 0
    %311 = vmatpush1.bf16.msra.mxu0 0
    %312 = vmatprep.subr.bf16.mxu0 0
    %313 = vmatpush1.bf16.msra.mxu0 0
    %314 = vmatprep.subr.bf16.mxu0 0
    %315 = vmatpush1.bf16.msra.mxu0 0
    %316 = vmatprep.subr.bf16.mxu0 0
    %317 = vmatpush1.bf16.msra.mxu0 0
    %318 = vmatprep.subr.bf16.mxu0 0
    %319 = vmatpush1.bf16.msra.mxu0 0
    %320 = vmatprep.subr.bf16.mxu0 0
    %321 = vmatpush1.bf16.msra.mxu0 0
    %322 = vmatprep.subr.bf16.mxu0 0
    %323 = vmatpush1.bf16.msra.mxu0 0
    %324 = vmatprep.subr.bf16.mxu0 0
    %325 = vmatpush1.bf16.msra.mxu0 0
    %326 = vmatprep.subr.bf16.mxu0 0
    %327 = vmatpush1.bf16.msra.mxu0 0
    %328 = vmatprep.subr.bf16.mxu0 0
    %329 = vmatpush1.bf16.msra.mxu0 0
    %330 = vmatprep.mubr.bf16.mxu0 0
    %331 = vmatmul.mubr.bf16.gmra.mrb[0].mxu0 %v296
    %v332 = vpop.f32.mrb[0].mxu0
    %v333 = vadd.f32 0.0, %v332
    %v334 = vpop.f32.mrb[0].mxu0
    %v335 = vadd.f32 0.0, %v334
    %v336 = vpop.f32.mrb[0].mxu0
    %v337 = vpop.f32.mrb[0].mxu0
    %338 = vdwg.mxu0
    %v339 = vrot.slane %v152, 1
    %v340 = vrot.slane %v154, 1
    %v343 = vsel %vm234, %v339, %v156
    %v344 = vsel %vm234, %v340, %v158
    %v345 = vadd.f32 %v343, %v333
    %v346 = vrot.slane %v152, 6
    %v347 = vrot.slane %v154, 6
    %v350 = vrot.slane %v156, 5
    %v351 = vrot.slane %v158, 5
    %v354 = vsel %vm234, %v346, %v350
    %v355 = vsel %vm234, %v347, %v351
    %v357 = vrot.slane %v335, 2
    %v359 = vadd.f32 %v355, %v357
    %v361 = vrot.slane %v359, 6
    %v363 = vsel %vm68, %v345, %v361
    %v364 = vxor.u32 %v363, 2147483648
    %v365 = vmul.f32 %v364, 1.442695
    %v366 = vpow.pop %v365
    %v367 = vadd.f32 %v366, 1.0
    %v368 = vrcp.pop %v367
    %v369 = vmul.f32 1.0, %v368
    %v370 = vtanh.pop %v363
    %v371 = vmul.f32 %v369, %v290
    %373 = vrot.lane.b32.xlu0 %v370, 32
    %v374 = vpop.permute.xlu0 %373
    %v376 = vmul.f32 %v369, %v374
    %378 = vrot.lane.b32.xlu0 %v376, 32
    %v379 = vpop.permute.xlu0 %378
    %v381 = vadd.f32 %v371, %v379
    %v382 = vtanh.pop %v381
    %384 = vrot.lane.b32.xlu0 %v382, 32
    %v385 = vpop.permute.xlu0 %384
    %v387 = vmul.f32 %v369, %v385
    %v388 = vsel %vm68, 1, 6
    %vm389 = vcmp.gt.s32.totalorder %v69, %v388
    %v390 = vsel %vm389, 1, 0
    %391 = vset.pattern.permute.xlu0 0
    %392 = vperm.xlu0 %391, %v390
    %v393 = vpop.permute.xlu0 %392
    %vm394 = vcmp.eq.s32.totalorder %v393, 1
    %v395 = vsel %vm394, %v387, %v289
    %v396 = vsel %vm394, %v381, %v290
    %v397 = vsel %vm394, %v387, 0.0
    %v398 = vpack.c.bf16 %v395, %v395
    %400 = vrot.lane.b32.xlu0 %v398, 64
    %v401 = vpop.permute.xlu0 %400
    %v403 = vsel %vm113, %v401, 0
    %405 = vmatprep.subr.bf16.mxu0 %v177
    %406 = vmatpush1.bf16.msra.mxu0 %v176
    %407 = vmatprep.subr.bf16.mxu0 %v179
    %408 = vmatpush1.bf16.msra.mxu0 %v178
    %409 = vmatprep.subr.bf16.mxu0 0
    %410 = vmatpush1.bf16.msra.mxu0 0
    %411 = vmatprep.subr.bf16.mxu0 0
    %412 = vmatpush1.bf16.msra.mxu0 0
    %413 = vmatprep.subr.bf16.mxu0 0
    %414 = vmatpush1.bf16.msra.mxu0 0
    %415 = vmatprep.subr.bf16.mxu0 0
    %416 = vmatpush1.bf16.msra.mxu0 0
    %417 = vmatprep.subr.bf16.mxu0 0
    %418 = vmatpush1.bf16.msra.mxu0 0
    %419 = vmatprep.subr.bf16.mxu0 0
    %420 = vmatpush1.bf16.msra.mxu0 0
    %421 = vmatprep.subr.bf16.mxu0 0
    %422 = vmatpush1.bf16.msra.mxu0 0
    %423 = vmatprep.subr.bf16.mxu0 0
    %424 = vmatpush1.bf16.msra.mxu0 0
    %425 = vmatprep.subr.bf16.mxu0 0
    %426 = vmatpush1.bf16.msra.mxu0 0
    %427 = vmatprep.subr.bf16.mxu0 0
    %428 = vmatpush1.bf16.msra.mxu0 0
    %429 = vmatprep.subr.bf16.mxu0 0
    %430 = vmatpush1.bf16.msra.mxu0 0
    %431 = vmatprep.subr.bf16.mxu0 0
    %432 = vmatpush1.bf16.msra.mxu0 0
    %433 = vmatprep.subr.bf16.mxu0 0
    %434 = vmatpush1.bf16.msra.mxu0 0
    %435 = vmatprep.subr.bf16.mxu0 0
    %436 = vmatpush1.bf16.msra.mxu0 0
    %437 = vmatprep.mubr.bf16.mxu0 0
    %438 = vmatmul.mubr.bf16.gmra.mrb[0].mxu0 %v403
    %v439 = vpop.f32.mrb[0].mxu0
    %v440 = vadd.f32 0.0, %v439
    %v441 = vpop.f32.mrb[0].mxu0
    %v442 = vadd.f32 0.0, %v441
    %v443 = vpop.f32.mrb[0].mxu0
    %v444 = vpop.f32.mrb[0].mxu0
    %445 = vdwg.mxu0
    %v446 = vrot.slane %v152, 2
    %v447 = vrot.slane %v154, 2
    %v450 = vrot.slane %v156, 1
    %v451 = vrot.slane %v158, 1
    %v454 = vsel %vm234, %v446, %v450
    %v455 = vsel %vm234, %v447, %v451
    %v456 = vadd.f32 %v454, %v440
    %v457 = vrot.slane %v152, 5
    %v458 = vrot.slane %v154, 5
    %v461 = vrot.slane %v156, 4
    %v462 = vrot.slane %v158, 4
    %v465 = vsel %vm234, %v457, %v461
    %v466 = vsel %vm234, %v458, %v462
    %v468 = vrot.slane %v442, 2
    %v470 = vadd.f32 %v466, %v468
    %v472 = vrot.slane %v470, 6
    %v474 = vsel %vm68, %v456, %v472
    %v475 = vxor.u32 %v474, 2147483648
    %v476 = vmul.f32 %v475, 1.442695
    %v477 = vpow.pop %v476
    %v478 = vadd.f32 %v477, 1.0
    %v479 = vrcp.pop %v478
    %v480 = vmul.f32 1.0, %v479
    %v481 = vtanh.pop %v474
    %v482 = vmul.f32 %v480, %v396
    %484 = vrot.lane.b32.xlu0 %v481, 32
    %v485 = vpop.permute.xlu0 %484
    %v487 = vmul.f32 %v480, %v485
    %489 = vrot.lane.b32.xlu0 %v487, 32
    %v490 = vpop.permute.xlu0 %489
    %v492 = vadd.f32 %v482, %v490
    %v493 = vtanh.pop %v492
    %495 = vrot.lane.b32.xlu0 %v493, 32
    %v496 = vpop.permute.xlu0 %495
    %v498 = vmul.f32 %v480, %v496
    %v499 = vsel %vm68, 2, 5
    %vm500 = vcmp.gt.s32.totalorder %v69, %v499
    %v501 = vsel %vm500, 1, 0
    %502 = vset.pattern.permute.xlu0 0
    %503 = vperm.xlu0 %502, %v501
    %v504 = vpop.permute.xlu0 %503
    %vm505 = vcmp.eq.s32.totalorder %v504, 1
    %v506 = vsel %vm505, %v498, %v395
    %v507 = vsel %vm505, %v492, %v396
    %v508 = vsel %vm505, %v498, 0.0
    %v509 = vpack.c.bf16 %v506, %v506
    %511 = vrot.lane.b32.xlu0 %v509, 64
    %v512 = vpop.permute.xlu0 %511
    %v514 = vsel %vm113, %v512, 0
    %516 = vmatprep.subr.bf16.mxu0 %v177
    %517 = vmatpush1.bf16.msra.mxu0 %v176
    %518 = vmatprep.subr.bf16.mxu0 %v179
    %519 = vmatpush1.bf16.msra.mxu0 %v178
    %520 = vmatprep.subr.bf16.mxu0 0
    %521 = vmatpush1.bf16.msra.mxu0 0
    %522 = vmatprep.subr.bf16.mxu0 0
    %523 = vmatpush1.bf16.msra.mxu0 0
    %524 = vmatprep.subr.bf16.mxu0 0
    %525 = vmatpush1.bf16.msra.mxu0 0
    %526 = vmatprep.subr.bf16.mxu0 0
    %527 = vmatpush1.bf16.msra.mxu0 0
    %528 = vmatprep.subr.bf16.mxu0 0
    %529 = vmatpush1.bf16.msra.mxu0 0
    %530 = vmatprep.subr.bf16.mxu0 0
    %531 = vmatpush1.bf16.msra.mxu0 0
    %532 = vmatprep.subr.bf16.mxu0 0
    %533 = vmatpush1.bf16.msra.mxu0 0
    %534 = vmatprep.subr.bf16.mxu0 0
    %535 = vmatpush1.bf16.msra.mxu0 0
    %536 = vmatprep.subr.bf16.mxu0 0
    %537 = vmatpush1.bf16.msra.mxu0 0
    %538 = vmatprep.subr.bf16.mxu0 0
    %539 = vmatpush1.bf16.msra.mxu0 0
    %540 = vmatprep.subr.bf16.mxu0 0
    %541 = vmatpush1.bf16.msra.mxu0 0
    %542 = vmatprep.subr.bf16.mxu0 0
    %543 = vmatpush1.bf16.msra.mxu0 0
    %544 = vmatprep.subr.bf16.mxu0 0
    %545 = vmatpush1.bf16.msra.mxu0 0
    %546 = vmatprep.subr.bf16.mxu0 0
    %547 = vmatpush1.bf16.msra.mxu0 0
    %548 = vmatprep.mubr.bf16.mxu0 0
    %549 = vmatmul.mubr.bf16.gmra.mrb[0].mxu0 %v514
    %v550 = vpop.f32.mrb[0].mxu0
    %v551 = vadd.f32 0.0, %v550
    %v552 = vpop.f32.mrb[0].mxu0
    %v553 = vadd.f32 0.0, %v552
    %v554 = vpop.f32.mrb[0].mxu0
    %v555 = vpop.f32.mrb[0].mxu0
    %556 = vdwg.mxu0
    %v557 = vrot.slane %v152, 3
    %v558 = vrot.slane %v154, 3
    %v561 = vrot.slane %v156, 2
    %v562 = vrot.slane %v158, 2
    %v565 = vsel %vm234, %v557, %v561
    %v566 = vsel %vm234, %v558, %v562
    %v567 = vadd.f32 %v565, %v551
    %v568 = vrot.slane %v152, 4
    %v569 = vrot.slane %v154, 4
    %v572 = vrot.slane %v156, 3
    %v573 = vrot.slane %v158, 3
    %v576 = vsel %vm234, %v568, %v572
    %v577 = vsel %vm234, %v569, %v573
    %v579 = vrot.slane %v553, 2
    %v581 = vadd.f32 %v577, %v579
    %v583 = vrot.slane %v581, 6
    %v585 = vsel %vm68, %v567, %v583
    %v586 = vxor.u32 %v585, 2147483648
    %v587 = vmul.f32 %v586, 1.442695
    %v588 = vpow.pop %v587
    %v589 = vadd.f32 %v588, 1.0
    %v590 = vrcp.pop %v589
    %v591 = vmul.f32 1.0, %v590
    %v592 = vtanh.pop %v585
    %v593 = vmul.f32 %v591, %v507
    %595 = vrot.lane.b32.xlu0 %v592, 32
    %v596 = vpop.permute.xlu0 %595
    %v598 = vmul.f32 %v591, %v596
    %600 = vrot.lane.b32.xlu0 %v598, 32
    %v601 = vpop.permute.xlu0 %600
    %v603 = vadd.f32 %v593, %v601
    %v604 = vtanh.pop %v603
    %606 = vrot.lane.b32.xlu0 %v604, 32
    %v607 = vpop.permute.xlu0 %606
    %v609 = vmul.f32 %v591, %v607
    %v610 = vsel %vm68, 3, 4
    %vm611 = vcmp.gt.s32.totalorder %v69, %v610
    %v612 = vsel %vm611, 1, 0
    %613 = vset.pattern.permute.xlu0 0
    %614 = vperm.xlu0 %613, %v612
    %v615 = vpop.permute.xlu0 %614
    %vm616 = vcmp.eq.s32.totalorder %v615, 1
    %v617 = vsel %vm616, %v609, %v506
    %v618 = vsel %vm616, %v603, %v507
    %v619 = vsel %vm616, %v609, 0.0
    %v620 = vpack.c.bf16 %v617, %v617
    %622 = vrot.lane.b32.xlu0 %v620, 64
    %v623 = vpop.permute.xlu0 %622
    %v625 = vsel %vm113, %v623, 0
    %627 = vmatprep.subr.bf16.mxu0 %v177
    %628 = vmatpush1.bf16.msra.mxu0 %v176
    %629 = vmatprep.subr.bf16.mxu0 %v179
    %630 = vmatpush1.bf16.msra.mxu0 %v178
    %631 = vmatprep.subr.bf16.mxu0 0
    %632 = vmatpush1.bf16.msra.mxu0 0
    %633 = vmatprep.subr.bf16.mxu0 0
    %634 = vmatpush1.bf16.msra.mxu0 0
    %635 = vmatprep.subr.bf16.mxu0 0
    %636 = vmatpush1.bf16.msra.mxu0 0
    %637 = vmatprep.subr.bf16.mxu0 0
    %638 = vmatpush1.bf16.msra.mxu0 0
    %639 = vmatprep.subr.bf16.mxu0 0
    %640 = vmatpush1.bf16.msra.mxu0 0
    %641 = vmatprep.subr.bf16.mxu0 0
    %642 = vmatpush1.bf16.msra.mxu0 0
    %643 = vmatprep.subr.bf16.mxu0 0
    %644 = vmatpush1.bf16.msra.mxu0 0
    %645 = vmatprep.subr.bf16.mxu0 0
    %646 = vmatpush1.bf16.msra.mxu0 0
    %647 = vmatprep.subr.bf16.mxu0 0
    %648 = vmatpush1.bf16.msra.mxu0 0
    %649 = vmatprep.subr.bf16.mxu0 0
    %650 = vmatpush1.bf16.msra.mxu0 0
    %651 = vmatprep.subr.bf16.mxu0 0
    %652 = vmatpush1.bf16.msra.mxu0 0
    %653 = vmatprep.subr.bf16.mxu0 0
    %654 = vmatpush1.bf16.msra.mxu0 0
    %655 = vmatprep.subr.bf16.mxu0 0
    %656 = vmatpush1.bf16.msra.mxu0 0
    %657 = vmatprep.subr.bf16.mxu0 0
    %658 = vmatpush1.bf16.msra.mxu0 0
    %659 = vmatprep.mubr.bf16.mxu0 0
    %660 = vmatmul.mubr.bf16.gmra.mrb[0].mxu0 %v625
    %v661 = vpop.f32.mrb[0].mxu0
    %v662 = vadd.f32 0.0, %v661
    %v663 = vpop.f32.mrb[0].mxu0
    %v664 = vadd.f32 0.0, %v663
    %v665 = vpop.f32.mrb[0].mxu0
    %v666 = vpop.f32.mrb[0].mxu0
    %667 = vdwg.mxu0
    %v668 = vadd.f32 %v576, %v662
    %v670 = vrot.slane %v664, 2
    %v672 = vadd.f32 %v566, %v670
    %v674 = vrot.slane %v672, 6
    %v676 = vsel %vm68, %v668, %v674
    %v677 = vxor.u32 %v676, 2147483648
    %v678 = vmul.f32 %v677, 1.442695
    %v679 = vpow.pop %v678
    %v680 = vadd.f32 %v679, 1.0
    %v681 = vrcp.pop %v680
    %v682 = vmul.f32 1.0, %v681
    %v683 = vtanh.pop %v676
    %v684 = vmul.f32 %v682, %v618
    %686 = vrot.lane.b32.xlu0 %v683, 32
    %v687 = vpop.permute.xlu0 %686
    %v689 = vmul.f32 %v682, %v687
    %691 = vrot.lane.b32.xlu0 %v689, 32
    %v692 = vpop.permute.xlu0 %691
    %v694 = vadd.f32 %v684, %v692
    %v695 = vtanh.pop %v694
    %697 = vrot.lane.b32.xlu0 %v695, 32
    %v698 = vpop.permute.xlu0 %697
    %v700 = vmul.f32 %v682, %v698
    %v701 = vsel %vm68, 4, 3
    %vm702 = vcmp.gt.s32.totalorder %v69, %v701
    %v703 = vsel %vm702, 1, 0
    %704 = vset.pattern.permute.xlu0 0
    %705 = vperm.xlu0 %704, %v703
    %v706 = vpop.permute.xlu0 %705
    %vm707 = vcmp.eq.s32.totalorder %v706, 1
    %v708 = vsel %vm707, %v700, %v617
    %v709 = vsel %vm707, %v694, %v618
    %v710 = vsel %vm707, %v700, 0.0
    %v711 = vpack.c.bf16 %v708, %v708
    %713 = vrot.lane.b32.xlu0 %v711, 64
    %v714 = vpop.permute.xlu0 %713
    %v716 = vsel %vm113, %v714, 0
    %718 = vmatprep.subr.bf16.mxu0 %v177
    %719 = vmatpush1.bf16.msra.mxu0 %v176
    %720 = vmatprep.subr.bf16.mxu0 %v179
    %721 = vmatpush1.bf16.msra.mxu0 %v178
    %722 = vmatprep.subr.bf16.mxu0 0
    %723 = vmatpush1.bf16.msra.mxu0 0
    %724 = vmatprep.subr.bf16.mxu0 0
    %725 = vmatpush1.bf16.msra.mxu0 0
    %726 = vmatprep.subr.bf16.mxu0 0
    %727 = vmatpush1.bf16.msra.mxu0 0
    %728 = vmatprep.subr.bf16.mxu0 0
    %729 = vmatpush1.bf16.msra.mxu0 0
    %730 = vmatprep.subr.bf16.mxu0 0
    %731 = vmatpush1.bf16.msra.mxu0 0
    %732 = vmatprep.subr.bf16.mxu0 0
    %733 = vmatpush1.bf16.msra.mxu0 0
    %734 = vmatprep.subr.bf16.mxu0 0
    %735 = vmatpush1.bf16.msra.mxu0 0
    %736 = vmatprep.subr.bf16.mxu0 0
    %737 = vmatpush1.bf16.msra.mxu0 0
    %738 = vmatprep.subr.bf16.mxu0 0
    %739 = vmatpush1.bf16.msra.mxu0 0
    %740 = vmatprep.subr.bf16.mxu0 0
    %741 = vmatpush1.bf16.msra.mxu0 0
    %742 = vmatprep.subr.bf16.mxu0 0
    %743 = vmatpush1.bf16.msra.mxu0 0
    %744 = vmatprep.subr.bf16.mxu0 0
    %745 = vmatpush1.bf16.msra.mxu0 0
    %746 = vmatprep.subr.bf16.mxu0 0
    %747 = vmatpush1.bf16.msra.mxu0 0
    %748 = vmatprep.subr.bf16.mxu0 0
    %749 = vmatpush1.bf16.msra.mxu0 0
    %750 = vmatprep.mubr.bf16.mxu0 0
    %751 = vmatmul.mubr.bf16.gmra.mrb[0].mxu0 %v716
    %v752 = vpop.f32.mrb[0].mxu0
    %v753 = vadd.f32 0.0, %v752
    %v754 = vpop.f32.mrb[0].mxu0
    %v755 = vadd.f32 0.0, %v754
    %v756 = vpop.f32.mrb[0].mxu0
    %v757 = vpop.f32.mrb[0].mxu0
    %758 = vdwg.mxu0
    %v759 = vadd.f32 %v465, %v753
    %v761 = vrot.slane %v755, 2
    %v763 = vadd.f32 %v455, %v761
    %v765 = vrot.slane %v763, 6
    %v767 = vsel %vm68, %v759, %v765
    %v768 = vxor.u32 %v767, 2147483648
    %v769 = vmul.f32 %v768, 1.442695
    %v770 = vpow.pop %v769
    %v771 = vadd.f32 %v770, 1.0
    %v772 = vrcp.pop %v771
    %v773 = vmul.f32 1.0, %v772
    %v774 = vtanh.pop %v767
    %v775 = vmul.f32 %v773, %v709
    %777 = vrot.lane.b32.xlu0 %v774, 32
    %v778 = vpop.permute.xlu0 %777
    %v780 = vmul.f32 %v773, %v778
    %782 = vrot.lane.b32.xlu0 %v780, 32
    %v783 = vpop.permute.xlu0 %782
    %v785 = vadd.f32 %v775, %v783
    %v786 = vtanh.pop %v785
    %788 = vrot.lane.b32.xlu0 %v786, 32
    %v789 = vpop.permute.xlu0 %788
    %v791 = vmul.f32 %v773, %v789
    %v792 = vsel %vm68, 5, 2
    %vm793 = vcmp.gt.s32.totalorder %v69, %v792
    %v794 = vsel %vm793, 1, 0
    %795 = vset.pattern.permute.xlu0 0
    %796 = vperm.xlu0 %795, %v794
    %v797 = vpop.permute.xlu0 %796
    %vm798 = vcmp.eq.s32.totalorder %v797, 1
    %v799 = vsel %vm798, %v791, %v708
    %v800 = vsel %vm798, %v785, %v709
    %v801 = vsel %vm798, %v791, 0.0
    %v802 = vpack.c.bf16 %v799, %v799
    %804 = vrot.lane.b32.xlu0 %v802, 64
    %v805 = vpop.permute.xlu0 %804
    %v807 = vsel %vm113, %v805, 0
    %809 = vmatprep.subr.bf16.mxu0 %v177
    %810 = vmatpush1.bf16.msra.mxu0 %v176
    %811 = vmatprep.subr.bf16.mxu0 %v179
    %812 = vmatpush1.bf16.msra.mxu0 %v178
    %813 = vmatprep.subr.bf16.mxu0 0
    %814 = vmatpush1.bf16.msra.mxu0 0
    %815 = vmatprep.subr.bf16.mxu0 0
    %816 = vmatpush1.bf16.msra.mxu0 0
    %817 = vmatprep.subr.bf16.mxu0 0
    %818 = vmatpush1.bf16.msra.mxu0 0
    %819 = vmatprep.subr.bf16.mxu0 0
    %820 = vmatpush1.bf16.msra.mxu0 0
    %821 = vmatprep.subr.bf16.mxu0 0
    %822 = vmatpush1.bf16.msra.mxu0 0
    %823 = vmatprep.subr.bf16.mxu0 0
    %824 = vmatpush1.bf16.msra.mxu0 0
    %825 = vmatprep.subr.bf16.mxu0 0
    %826 = vmatpush1.bf16.msra.mxu0 0
    %827 = vmatprep.subr.bf16.mxu0 0
    %828 = vmatpush1.bf16.msra.mxu0 0
    %829 = vmatprep.subr.bf16.mxu0 0
    %830 = vmatpush1.bf16.msra.mxu0 0
    %831 = vmatprep.subr.bf16.mxu0 0
    %832 = vmatpush1.bf16.msra.mxu0 0
    %833 = vmatprep.subr.bf16.mxu0 0
    %834 = vmatpush1.bf16.msra.mxu0 0
    %835 = vmatprep.subr.bf16.mxu0 0
    %836 = vmatpush1.bf16.msra.mxu0 0
    %837 = vmatprep.subr.bf16.mxu0 0
    %838 = vmatpush1.bf16.msra.mxu0 0
    %839 = vmatprep.subr.bf16.mxu0 0
    %840 = vmatpush1.bf16.msra.mxu0 0
    %841 = vmatprep.mubr.bf16.mxu0 0
    %842 = vmatmul.mubr.bf16.gmra.mrb[0].mxu0 %v807
    %v843 = vpop.f32.mrb[0].mxu0
    %v844 = vadd.f32 0.0, %v843
    %v845 = vpop.f32.mrb[0].mxu0
    %v846 = vadd.f32 0.0, %v845
    %v847 = vpop.f32.mrb[0].mxu0
    %v848 = vpop.f32.mrb[0].mxu0
    %849 = vdwg.mxu0
    %v850 = vadd.f32 %v354, %v844
    %v852 = vrot.slane %v846, 2
    %v854 = vadd.f32 %v344, %v852
    %v856 = vrot.slane %v854, 6
    %v858 = vsel %vm68, %v850, %v856
    %v859 = vxor.u32 %v858, 2147483648
    %v860 = vmul.f32 %v859, 1.442695
    %v861 = vpow.pop %v860
    %v862 = vadd.f32 %v861, 1.0
    %v863 = vrcp.pop %v862
    %v864 = vmul.f32 1.0, %v863
    %v865 = vtanh.pop %v858
    %v866 = vmul.f32 %v864, %v800
    %868 = vrot.lane.b32.xlu0 %v865, 32
    %v869 = vpop.permute.xlu0 %868
    %v871 = vmul.f32 %v864, %v869
    %873 = vrot.lane.b32.xlu0 %v871, 32
    %v874 = vpop.permute.xlu0 %873
    %v876 = vadd.f32 %v866, %v874
    %v877 = vtanh.pop %v876
    %879 = vrot.lane.b32.xlu0 %v877, 32
    %v880 = vpop.permute.xlu0 %879
    %v882 = vmul.f32 %v864, %v880
    %v883 = vsel %vm68, 6, 1
    %vm884 = vcmp.gt.s32.totalorder %v69, %v883
    %v885 = vsel %vm884, 1, 0
    %886 = vset.pattern.permute.xlu0 0
    %887 = vperm.xlu0 %886, %v885
    %v888 = vpop.permute.xlu0 %887
    %vm889 = vcmp.eq.s32.totalorder %v888, 1
    %v890 = vsel %vm889, %v882, %v799
    %v891 = vsel %vm889, %v876, %v800
    %v892 = vsel %vm889, %v882, 0.0
    %v893 = vpack.c.bf16 %v890, %v890
    %895 = vrot.lane.b32.xlu0 %v893, 64
    %v896 = vpop.permute.xlu0 %895
    %v898 = vsel %vm113, %v896, 0
    %900 = vmatprep.subr.bf16.mxu0 %v177
    %901 = vmatpush1.bf16.msra.mxu0 %v176
    %902 = vmatprep.subr.bf16.mxu0 %v179
    %903 = vmatpush1.bf16.msra.mxu0 %v178
    %904 = vmatprep.subr.bf16.mxu0 0
    %905 = vmatpush1.bf16.msra.mxu0 0
    %906 = vmatprep.subr.bf16.mxu0 0
    %907 = vmatpush1.bf16.msra.mxu0 0
    %908 = vmatprep.subr.bf16.mxu0 0
    %909 = vmatpush1.bf16.msra.mxu0 0
    %910 = vmatprep.subr.bf16.mxu0 0
    %911 = vmatpush1.bf16.msra.mxu0 0
    %912 = vmatprep.subr.bf16.mxu0 0
    %913 = vmatpush1.bf16.msra.mxu0 0
    %914 = vmatprep.subr.bf16.mxu0 0
    %915 = vmatpush1.bf16.msra.mxu0 0
    %916 = vmatprep.subr.bf16.mxu0 0
    %917 = vmatpush1.bf16.msra.mxu0 0
    %918 = vmatprep.subr.bf16.mxu0 0
    %919 = vmatpush1.bf16.msra.mxu0 0
    %920 = vmatprep.subr.bf16.mxu0 0
    %921 = vmatpush1.bf16.msra.mxu0 0
    %922 = vmatprep.subr.bf16.mxu0 0
    %923 = vmatpush1.bf16.msra.mxu0 0
    %924 = vmatprep.subr.bf16.mxu0 0
    %925 = vmatpush1.bf16.msra.mxu0 0
    %926 = vmatprep.subr.bf16.mxu0 0
    %927 = vmatpush1.bf16.msra.mxu0 0
    %928 = vmatprep.subr.bf16.mxu0 0
    %929 = vmatpush1.bf16.msra.mxu0 0
    %930 = vmatprep.subr.bf16.mxu0 0
    %931 = vmatpush1.bf16.msra.mxu0 0
    %932 = vmatprep.mubr.bf16.mxu0 0
    %933 = vmatmul.mubr.bf16.gmra.mrb[0].mxu0 %v898
    %v934 = vpop.f32.mrb[0].mxu0
    %v935 = vadd.f32 0.0, %v934
    %v936 = vpop.f32.mrb[0].mxu0
    %v937 = vadd.f32 0.0, %v936
    %v938 = vpop.f32.mrb[0].mxu0
    %v939 = vpop.f32.mrb[0].mxu0
    %940 = vdwg.mxu0
    %v941 = vadd.f32 %v248, %v935
    %v943 = vrot.slane %v937, 2
    %v945 = vadd.f32 %v236, %v943
    %v947 = vrot.slane %v945, 6
    %v949 = vsel %vm68, %v941, %v947
    %v950 = vxor.u32 %v949, 2147483648
    %v951 = vmul.f32 %v950, 1.442695
    %v952 = vpow.pop %v951
    %v953 = vadd.f32 %v952, 1.0
    %v954 = vrcp.pop %v953
    %v955 = vmul.f32 1.0, %v954
    %v956 = vtanh.pop %v949
    %v957 = vmul.f32 %v955, %v891
    %959 = vrot.lane.b32.xlu0 %v956, 32
    %v960 = vpop.permute.xlu0 %959
    %v962 = vmul.f32 %v955, %v960
    %964 = vrot.lane.b32.xlu0 %v962, 32
    %v965 = vpop.permute.xlu0 %964
    %v967 = vadd.f32 %v957, %v965
    %v968 = vtanh.pop %v967
    %970 = vrot.lane.b32.xlu0 %v968, 32
    %v971 = vpop.permute.xlu0 %970
    %v973 = vmul.f32 %v955, %v971
    %v974 = vsel %vm68, 7, 0
    %vm975 = vcmp.gt.s32.totalorder %v69, %v974
    %v976 = vsel %vm975, 1, 0
    %977 = vset.pattern.permute.xlu0 0
    %978 = vperm.xlu0 %977, %v976
    %v979 = vpop.permute.xlu0 %978
    %vm980 = vcmp.eq.s32.totalorder %v979, 1
    %v981 = vsel %vm980, %v973, 0.0
    %v983 = vrot.slane %v981, 2
    %v985 = vadd.f32 %v289, %v983
    %v987 = vrot.slane %v892, 2
    %v989 = vadd.f32 %v397, %v987
    %v991 = vrot.slane %v801, 2
    %v993 = vadd.f32 %v508, %v991
    %v995 = vrot.slane %v710, 2
    %v997 = vadd.f32 %v619, %v995
    %v999 = vrot.slane %v619, 2
    %v1001 = vadd.f32 %v710, %v999
    %v1003 = vrot.slane %v508, 2
    %v1005 = vadd.f32 %v801, %v1003
    %v1007 = vrot.slane %v397, 2
    %v1009 = vadd.f32 %v892, %v1007
    %v1011 = vrot.slane %v289, 2
    %v1013 = vadd.f32 %v981, %v1011
    %v1015 = vrot.slane %v989, 7
    %v1018 = vrot.slane %v993, 6
    %v1021 = vrot.slane %v997, 5
    %v1024 = vrot.slane %v1001, 4
    %v1027 = vrot.slane %v1005, 3
    %v1030 = vrot.slane %v1009, 2
    %v1033 = vrot.slane %v1013, 1
    %v1036 = vrot.slane %v985, 1
    %v1038 = vrot.slane %v993, 7
    %v1040 = vrot.slane %v997, 6
    %v1042 = vrot.slane %v1001, 5
    %v1044 = vrot.slane %v1005, 4
    %v1046 = vrot.slane %v1009, 3
    %v1048 = vrot.slane %v1013, 2
    %v1050 = vsel %vm234, %v985, %v1015
    %v1051 = vsel %vm68, %v1050, %v1018
    %vm1052 = vcmask 1042432
    %v1053 = vsel %vm1052, %v1051, %v1021
    %vm1054 = vcmask 1043456
    %v1055 = vsel %vm1054, %v1053, %v1024
    %vm1056 = vcmask 1044480
    %v1057 = vsel %vm1056, %v1055, %v1027
    %vm1058 = vcmask 1045504
    %v1059 = vsel %vm1058, %v1057, %v1030
    %vm1060 = vcmask 1046528
    %v1061 = vsel %vm1060, %v1059, %v1033
    %v1062 = vsel %vm234, %v1036, %v989
    %v1063 = vsel %vm68, %v1062, %v1038
    %v1064 = vsel %vm1052, %v1063, %v1040
    %v1065 = vsel %vm1054, %v1064, %v1042
    %v1066 = vsel %vm1056, %v1065, %v1044
    %v1067 = vsel %vm1058, %v1066, %v1046
    %v1068 = vsel %vm1060, %v1067, %v1048
    %v1069 = vpack.c.bf16 %v1068, %v1061
    %v1070 = vld [vmem:[%s5] sm:$0xf]
    %v1071 = vld [vmem:[%s5 + $0x4] sm:$0xf]
    %v1072 = vld [vmem:[%s5 + $0x8] sm:$0xf]
    %v1073 = vld [vmem:[%s5 + $0xc] sm:$0xf]
    %1075 = vrot.lane.b32.xlu0 %v1069, 64
    %v1076 = vpop.permute.xlu0 %1075
    %v1081 = vunpack.c.l.b16 %v1070
    %v1082 = vunpack.c.l.b16 %v1071
    %v1083 = vunpack.c.l.b16 %v1072
    %v1084 = vunpack.c.l.b16 %v1073
    %v1085 = vpack.c.b16 %v1082, %v1081
    %v1086 = vpack.c.b16 %v1084, %v1083
    %v1090 = vsel %vm113, %v1076, 0
    %1092 = vmatprep.subr.bf16.mxu0 0
    %1093 = vmatpush1.bf16.msra.mxu0 %v1085
    %1094 = vmatprep.subr.bf16.mxu0 0
    %1095 = vmatpush1.bf16.msra.mxu0 %v1086
    %1096 = vmatprep.subr.bf16.mxu0 0
    %1097 = vmatpush1.bf16.msra.mxu0 0
    %1098 = vmatprep.subr.bf16.mxu0 0
    %1099 = vmatpush1.bf16.msra.mxu0 0
    %1100 = vmatprep.subr.bf16.mxu0 0
    %1101 = vmatpush1.bf16.msra.mxu0 0
    %1102 = vmatprep.subr.bf16.mxu0 0
    %1103 = vmatpush1.bf16.msra.mxu0 0
    %1104 = vmatprep.subr.bf16.mxu0 0
    %1105 = vmatpush1.bf16.msra.mxu0 0
    %1106 = vmatprep.subr.bf16.mxu0 0
    %1107 = vmatpush1.bf16.msra.mxu0 0
    %1108 = vmatprep.subr.bf16.mxu0 0
    %1109 = vmatpush1.bf16.msra.mxu0 0
    %1110 = vmatprep.subr.bf16.mxu0 0
    %1111 = vmatpush1.bf16.msra.mxu0 0
    %1112 = vmatprep.subr.bf16.mxu0 0
    %1113 = vmatpush1.bf16.msra.mxu0 0
    %1114 = vmatprep.subr.bf16.mxu0 0
    %1115 = vmatpush1.bf16.msra.mxu0 0
    %1116 = vmatprep.subr.bf16.mxu0 0
    %1117 = vmatpush1.bf16.msra.mxu0 0
    %1118 = vmatprep.subr.bf16.mxu0 0
    %1119 = vmatpush1.bf16.msra.mxu0 0
    %1120 = vmatprep.subr.bf16.mxu0 0
    %1121 = vmatpush1.bf16.msra.mxu0 0
    %1122 = vmatprep.subr.bf16.mxu0 0
    %1123 = vmatpush1.bf16.msra.mxu0 0
    %1124 = vmatprep.mubr.bf16.mxu0 0
    %1125 = vmatmul.mubr.bf16.gmra.mrb[0].mxu0 %v1090
    %v1126 = vpop.f32.mrb[0].mxu0
    %v1127 = vadd.f32 0.0, %v1126
    %v1128 = vpop.f32.mrb[0].mxu0
    %v1129 = vpop.f32.mrb[0].mxu0
    %v1130 = vadd.f32 0.0, %v1129
    %v1131 = vpop.f32.mrb[0].mxu0
    %1132 = vdwg.mxu0
    %v1133 = vlaneseq
    %v1134 = vand.u32 %v1133, 127
    %1135 = vset.pattern.permute.xlu0 0
    %1136 = vperm.xlu0 %1135, %v66
    %v1137 = vpop.permute.xlu0 %1136
    %vm1138 = vcmp.lt.s32.totalorder %v1134, %v1137
    %v1139 = vsel %vm1138, 1, 0
    %v1140 = vcvt.s32.f32 %v1139
    %v1141 = vsub.f32 1.0, %v1140
    %v1142 = vmul.f32 %v1141, -100000.0
    %1144 = vrot.lane.b32.xlu0 %v1127, 96
    %v1145 = vpop.permute.xlu0 %1144
    %v1146 = vsel %vm113, %v1127, 0
    %v1148 = vsel %vm113, %v1145, 0
    %1150 = vmatprep.subr.mxu0 0.0
    %1151 = vmatpush1.xpose.msra.mxu0 %v1148
    %1152 = vmatprep.subr.mxu0 0.0
    %1153 = vmatpush1.xpose.msra.mxu0 0.0
    %1154 = vmatprep.subr.mxu0 0.0
    %1155 = vmatpush1.xpose.msra.mxu0 0.0
    %1156 = vmatprep.subr.mxu0 0.0
    %1157 = vmatpush1.xpose.msra.mxu0 0.0
    %1158 = vmatprep.subr.mxu0 0.0
    %1159 = vmatpush1.xpose.msra.mxu0 0.0
    %1160 = vmatprep.subr.mxu0 0.0
    %1161 = vmatpush1.xpose.msra.mxu0 0.0
    %1162 = vmatprep.subr.mxu0 0.0
    %1163 = vmatpush1.xpose.msra.mxu0 0.0
    %1164 = vmatprep.subr.mxu0 0.0
    %1165 = vmatpush1.xpose.msra.mxu0 0.0
    %1166 = vmatprep.subr.mxu0 0.0
    %1167 = vmatpush1.xpose.msra.mxu0 0.0
    %1168 = vmatprep.subr.mxu0 0.0
    %1169 = vmatpush1.xpose.msra.mxu0 0.0
    %1170 = vmatprep.subr.mxu0 0.0
    %1171 = vmatpush1.xpose.msra.mxu0 0.0
    %1172 = vmatprep.subr.mxu0 0.0
    %1173 = vmatpush1.xpose.msra.mxu0 0.0
    %1174 = vmatprep.subr.mxu0 0.0
    %1175 = vmatpush1.xpose.msra.mxu0 0.0
    %1176 = vmatprep.subr.mxu0 0.0
    %1177 = vmatpush1.xpose.msra.mxu0 0.0
    %1178 = vmatprep.subr.mxu0 0.0
    %1179 = vmatpush1.xpose.msra.mxu0 0.0
    %1180 = vmatprep.subr.mxu0 0.0
    %1181 = vmatpush1.xpose.msra.mxu0 0.0
    %1182 = vmatprep.subr.mxu0 0.0
    %1183 = vmatpush1.xpose.msra.mxu0 0.0
    %1184 = vmatprep.subr.mxu0 0.0
    %1185 = vmatpush1.xpose.msra.mxu0 0.0
    %1186 = vmatprep.subr.mxu0 0.0
    %1187 = vmatpush1.xpose.msra.mxu0 0.0
    %1188 = vmatprep.subr.mxu0 0.0
    %1189 = vmatpush1.xpose.msra.mxu0 0.0
    %1190 = vmatprep.subr.mxu0 0.0
    %1191 = vmatpush1.xpose.msra.mxu0 0.0
    %1192 = vmatprep.subr.mxu0 0.0
    %1193 = vmatpush1.xpose.msra.mxu0 0.0
    %1194 = vmatprep.subr.mxu0 0.0
    %1195 = vmatpush1.xpose.msra.mxu0 0.0
    %1196 = vmatprep.subr.mxu0 0.0
    %1197 = vmatpush1.xpose.msra.mxu0 0.0
    %1198 = vmatprep.subr.mxu0 0.0
    %1199 = vmatpush1.xpose.msra.mxu0 0.0
    %1200 = vmatprep.subr.mxu0 0.0
    %1201 = vmatpush1.xpose.msra.mxu0 0.0
    %1202 = vmatprep.subr.mxu0 0.0
    %1203 = vmatpush1.xpose.msra.mxu0 0.0
    %1204 = vmatprep.subr.mxu0 0.0
    %1205 = vmatpush1.xpose.msra.mxu0 0.0
    %1206 = vmatprep.subr.mxu0 0.0
    %1207 = vmatpush1.xpose.msra.mxu0 0.0
    %1208 = vmatprep.subr.mxu0 0.0
    %1209 = vmatpush1.xpose.msra.mxu0 0.0
    %1210 = vmatprep.subr.mxu0 0.0
    %1211 = vmatpush1.xpose.msra.mxu0 0.0
    %1212 = vmatprep.subr.mxu0 0.0
    %1213 = vmatpush1.xpose.msra.mxu0 0.0
    %1214 = vmatprep.mubr.f32.mxu0 0.0
    %1215 = vmatmul.mubr.f32.gmra.mrb[0].mxu0 %v1146
    %v1216 = vpop.f32.mrb[0].mxu0
    %v1217 = vadd.f32 0.0, %v1216
    %v1218 = vpop.f32.mrb[0].mxu0
    %1219 = vdwg.mxu0
    %v1220 = vmul.f32 %v1217, 0.17677669
    %v1221 = vlaneseq
    %v1222 = vshrl.u32 %v1221, 7
    %v1223 = vsub.s32 0, %v1222
    %v1224 = vrot.slane %v1142, %v1223
    %v1225 = vadd.f32 %v1220, %v1224
    %vm1226 = vcmask 64512
    %v1227 = vsel %vm1226, %v1225, -inf
    %1228 = vmax.xlane.f32.xlu0 %v1227
    %v1229 = vpop.xlane.xlu0 %1228
    %v1230 = vsub.f32 %v1225, %v1229
    %v1231 = vmul.f32 %v1230, 1.442695
    %v1232 = vpow.pop %v1231
    %v1233 = vsel %vm1226, %v1232, 0.0
    %1234 = vadd.xlane.f32.xlu0 %v1233
    %v1235 = vpop.xlane.xlu0 %1234
    %v1236 = vrcp.pop %v1235
    %v1237 = vmul.f32 %v1232, %v1236
    %1238 = vrot.lane.b32.xlu0 %v1127, 64
    %v1239 = vpop.permute.xlu0 %1238
    %v1242 = vsel %vm1226, %v1237, 0
    %1244 = vmatprep.subr.mxu0 0.0
    %1245 = vmatpush1.msra.mxu0 %v1239
    %1246 = vmatprep.subr.mxu0 0.0
    %1247 = vmatpush1.msra.mxu0 0.0
    %1248 = vmatprep.subr.mxu0 0.0
    %1249 = vmatpush1.msra.mxu0 0.0
    %1250 = vmatprep.subr.mxu0 0.0
    %1251 = vmatpush1.msra.mxu0 0.0
    %1252 = vmatprep.subr.mxu0 0.0
    %1253 = vmatpush1.msra.mxu0 0.0
    %1254 = vmatprep.subr.mxu0 0.0
    %1255 = vmatpush1.msra.mxu0 0.0
    %1256 = vmatprep.subr.mxu0 0.0
    %1257 = vmatpush1.msra.mxu0 0.0
    %1258 = vmatprep.subr.mxu0 0.0
    %1259 = vmatpush1.msra.mxu0 0.0
    %1260 = vmatprep.subr.mxu0 0.0
    %1261 = vmatpush1.msra.mxu0 0.0
    %1262 = vmatprep.subr.mxu0 0.0
    %1263 = vmatpush1.msra.mxu0 0.0
    %1264 = vmatprep.subr.mxu0 0.0
    %1265 = vmatpush1.msra.mxu0 0.0
    %1266 = vmatprep.subr.mxu0 0.0
    %1267 = vmatpush1.msra.mxu0 0.0
    %1268 = vmatprep.subr.mxu0 0.0
    %1269 = vmatpush1.msra.mxu0 0.0
    %1270 = vmatprep.subr.mxu0 0.0
    %1271 = vmatpush1.msra.mxu0 0.0
    %1272 = vmatprep.subr.mxu0 0.0
    %1273 = vmatpush1.msra.mxu0 0.0
    %1274 = vmatprep.subr.mxu0 0.0
    %1275 = vmatpush1.msra.mxu0 0.0
    %1276 = vmatprep.subr.mxu0 0.0
    %1277 = vmatpush1.msra.mxu0 0.0
    %1278 = vmatprep.subr.mxu0 0.0
    %1279 = vmatpush1.msra.mxu0 0.0
    %1280 = vmatprep.subr.mxu0 0.0
    %1281 = vmatpush1.msra.mxu0 0.0
    %1282 = vmatprep.subr.mxu0 0.0
    %1283 = vmatpush1.msra.mxu0 0.0
    %1284 = vmatprep.subr.mxu0 0.0
    %1285 = vmatpush1.msra.mxu0 0.0
    %1286 = vmatprep.subr.mxu0 0.0
    %1287 = vmatpush1.msra.mxu0 0.0
    %1288 = vmatprep.subr.mxu0 0.0
    %1289 = vmatpush1.msra.mxu0 0.0
    %1290 = vmatprep.subr.mxu0 0.0
    %1291 = vmatpush1.msra.mxu0 0.0
    %1292 = vmatprep.subr.mxu0 0.0
    %1293 = vmatpush1.msra.mxu0 0.0
    %1294 = vmatprep.subr.mxu0 0.0
    %1295 = vmatpush1.msra.mxu0 0.0
    %1296 = vmatprep.subr.mxu0 0.0
    %1297 = vmatpush1.msra.mxu0 0.0
    %1298 = vmatprep.subr.mxu0 0.0
    %1299 = vmatpush1.msra.mxu0 0.0
    %1300 = vmatprep.subr.mxu0 0.0
    %1301 = vmatpush1.msra.mxu0 0.0
    %1302 = vmatprep.subr.mxu0 0.0
    %1303 = vmatpush1.msra.mxu0 0.0
    %1304 = vmatprep.subr.mxu0 0.0
    %1305 = vmatpush1.msra.mxu0 0.0
    %1306 = vmatprep.subr.mxu0 0.0
    %1307 = vmatpush1.msra.mxu0 0.0
    %1308 = vmatprep.mubr.f32.mxu0 0.0
    %1309 = vmatmul.mubr.f32.gmra.mrb[0].mxu0 %v1242
    %v1310 = vpop.f32.mrb[0].mxu0
    %v1311 = vadd.f32 0.0, %v1310
    %v1312 = vpop.f32.mrb[0].mxu0
    %1313 = vdwg.mxu0
    %v1314 = vsel %vm113, %v1311, 0.0
    %v1315 = vrot.slane %v1314, 4
    %v1316 = vadd.f32 %v1314, %v1315
    %v1317 = vrot.slane %v1316, 2
    %v1318 = vadd.f32 %v1316, %v1317
    %v1319 = vrot.slane %v1318, 1
    %v1320 = vadd.f32 %v1318, %v1319
    %1322 = vrot.lane.b32.xlu0 %v1130, 96
    %v1323 = vpop.permute.xlu0 %1322
    %v1324 = vsel %vm113, %v1130, 0
    %v1326 = vsel %vm113, %v1323, 0
    %1328 = vmatprep.subr.mxu0 0.0
    %1329 = vmatpush1.xpose.msra.mxu0 %v1326
    %1330 = vmatprep.subr.mxu0 0.0
    %1331 = vmatpush1.xpose.msra.mxu0 0.0
    %1332 = vmatprep.subr.mxu0 0.0
    %1333 = vmatpush1.xpose.msra.mxu0 0.0
    %1334 = vmatprep.subr.mxu0 0.0
    %1335 = vmatpush1.xpose.msra.mxu0 0.0
    %1336 = vmatprep.subr.mxu0 0.0
    %1337 = vmatpush1.xpose.msra.mxu0 0.0
    %1338 = vmatprep.subr.mxu0 0.0
    %1339 = vmatpush1.xpose.msra.mxu0 0.0
    %1340 = vmatprep.subr.mxu0 0.0
    %1341 = vmatpush1.xpose.msra.mxu0 0.0
    %1342 = vmatprep.subr.mxu0 0.0
    %1343 = vmatpush1.xpose.msra.mxu0 0.0
    %1344 = vmatprep.subr.mxu0 0.0
    %1345 = vmatpush1.xpose.msra.mxu0 0.0
    %1346 = vmatprep.subr.mxu0 0.0
    %1347 = vmatpush1.xpose.msra.mxu0 0.0
    %1348 = vmatprep.subr.mxu0 0.0
    %1349 = vmatpush1.xpose.msra.mxu0 0.0
    %1350 = vmatprep.subr.mxu0 0.0
    %1351 = vmatpush1.xpose.msra.mxu0 0.0
    %1352 = vmatprep.subr.mxu0 0.0
    %1353 = vmatpush1.xpose.msra.mxu0 0.0
    %1354 = vmatprep.subr.mxu0 0.0
    %1355 = vmatpush1.xpose.msra.mxu0 0.0
    %1356 = vmatprep.subr.mxu0 0.0
    %1357 = vmatpush1.xpose.msra.mxu0 0.0
    %1358 = vmatprep.subr.mxu0 0.0
    %1359 = vmatpush1.xpose.msra.mxu0 0.0
    %1360 = vmatprep.subr.mxu0 0.0
    %1361 = vmatpush1.xpose.msra.mxu0 0.0
    %1362 = vmatprep.subr.mxu0 0.0
    %1363 = vmatpush1.xpose.msra.mxu0 0.0
    %1364 = vmatprep.subr.mxu0 0.0
    %1365 = vmatpush1.xpose.msra.mxu0 0.0
    %1366 = vmatprep.subr.mxu0 0.0
    %1367 = vmatpush1.xpose.msra.mxu0 0.0
    %1368 = vmatprep.subr.mxu0 0.0
    %1369 = vmatpush1.xpose.msra.mxu0 0.0
    %1370 = vmatprep.subr.mxu0 0.0
    %1371 = vmatpush1.xpose.msra.mxu0 0.0
    %1372 = vmatprep.subr.mxu0 0.0
    %1373 = vmatpush1.xpose.msra.mxu0 0.0
    %1374 = vmatprep.subr.mxu0 0.0
    %1375 = vmatpush1.xpose.msra.mxu0 0.0
    %1376 = vmatprep.subr.mxu0 0.0
    %1377 = vmatpush1.xpose.msra.mxu0 0.0
    %1378 = vmatprep.subr.mxu0 0.0
    %1379 = vmatpush1.xpose.msra.mxu0 0.0
    %1380 = vmatprep.subr.mxu0 0.0
    %1381 = vmatpush1.xpose.msra.mxu0 0.0
    %1382 = vmatprep.subr.mxu0 0.0
    %1383 = vmatpush1.xpose.msra.mxu0 0.0
    %1384 = vmatprep.subr.mxu0 0.0
    %1385 = vmatpush1.xpose.msra.mxu0 0.0
    %1386 = vmatprep.subr.mxu0 0.0
    %1387 = vmatpush1.xpose.msra.mxu0 0.0
    %1388 = vmatprep.subr.mxu0 0.0
    %1389 = vmatpush1.xpose.msra.mxu0 0.0
    %1390 = vmatprep.subr.mxu0 0.0
    %1391 = vmatpush1.xpose.msra.mxu0 0.0
    %1392 = vmatprep.mubr.f32.mxu0 0.0
    %1393 = vmatmul.mubr.f32.gmra.mrb[0].mxu0 %v1324
    %v1394 = vpop.f32.mrb[0].mxu0
    %v1395 = vadd.f32 0.0, %v1394
    %v1396 = vpop.f32.mrb[0].mxu0
    %1397 = vdwg.mxu0
    %v1398 = vmul.f32 %v1395, 0.17677669
    %v1399 = vlaneseq
    %v1400 = vshrl.u32 %v1399, 7
    %v1401 = vsub.s32 1, %v1400
    %v1402 = vrot.slane %v1142, %v1401
    %v1403 = vadd.f32 %v1398, %v1402
    %v1404 = vsel %vm1226, %v1403, -inf
    %1405 = vmax.xlane.f32.xlu0 %v1404
    %v1406 = vpop.xlane.xlu0 %1405
    %v1407 = vsub.f32 %v1403, %v1406
    %v1408 = vmul.f32 %v1407, 1.442695
    %v1409 = vpow.pop %v1408
    %v1410 = vsel %vm1226, %v1409, 0.0
    %1411 = vadd.xlane.f32.xlu0 %v1410
    %v1412 = vpop.xlane.xlu0 %1411
    %v1413 = vrcp.pop %v1412
    %v1414 = vmul.f32 %v1409, %v1413
    %1415 = vrot.lane.b32.xlu0 %v1130, 64
    %v1416 = vpop.permute.xlu0 %1415
    %v1419 = vsel %vm1226, %v1414, 0
    %1421 = vmatprep.subr.mxu0 0.0
    %1422 = vmatpush1.msra.mxu0 %v1416
    %1423 = vmatprep.subr.mxu0 0.0
    %1424 = vmatpush1.msra.mxu0 0.0
    %1425 = vmatprep.subr.mxu0 0.0
    %1426 = vmatpush1.msra.mxu0 0.0
    %1427 = vmatprep.subr.mxu0 0.0
    %1428 = vmatpush1.msra.mxu0 0.0
    %1429 = vmatprep.subr.mxu0 0.0
    %1430 = vmatpush1.msra.mxu0 0.0
    %1431 = vmatprep.subr.mxu0 0.0
    %1432 = vmatpush1.msra.mxu0 0.0
    %1433 = vmatprep.subr.mxu0 0.0
    %1434 = vmatpush1.msra.mxu0 0.0
    %1435 = vmatprep.subr.mxu0 0.0
    %1436 = vmatpush1.msra.mxu0 0.0
    %1437 = vmatprep.subr.mxu0 0.0
    %1438 = vmatpush1.msra.mxu0 0.0
    %1439 = vmatprep.subr.mxu0 0.0
    %1440 = vmatpush1.msra.mxu0 0.0
    %1441 = vmatprep.subr.mxu0 0.0
    %1442 = vmatpush1.msra.mxu0 0.0
    %1443 = vmatprep.subr.mxu0 0.0
    %1444 = vmatpush1.msra.mxu0 0.0
    %1445 = vmatprep.subr.mxu0 0.0
    %1446 = vmatpush1.msra.mxu0 0.0
    %1447 = vmatprep.subr.mxu0 0.0
    %1448 = vmatpush1.msra.mxu0 0.0
    %1449 = vmatprep.subr.mxu0 0.0
    %1450 = vmatpush1.msra.mxu0 0.0
    %1451 = vmatprep.subr.mxu0 0.0
    %1452 = vmatpush1.msra.mxu0 0.0
    %1453 = vmatprep.subr.mxu0 0.0
    %1454 = vmatpush1.msra.mxu0 0.0
    %1455 = vmatprep.subr.mxu0 0.0
    %1456 = vmatpush1.msra.mxu0 0.0
    %1457 = vmatprep.subr.mxu0 0.0
    %1458 = vmatpush1.msra.mxu0 0.0
    %1459 = vmatprep.subr.mxu0 0.0
    %1460 = vmatpush1.msra.mxu0 0.0
    %1461 = vmatprep.subr.mxu0 0.0
    %1462 = vmatpush1.msra.mxu0 0.0
    %1463 = vmatprep.subr.mxu0 0.0
    %1464 = vmatpush1.msra.mxu0 0.0
    %1465 = vmatprep.subr.mxu0 0.0
    %1466 = vmatpush1.msra.mxu0 0.0
    %1467 = vmatprep.subr.mxu0 0.0
    %1468 = vmatpush1.msra.mxu0 0.0
    %1469 = vmatprep.subr.mxu0 0.0
    %1470 = vmatpush1.msra.mxu0 0.0
    %1471 = vmatprep.subr.mxu0 0.0
    %1472 = vmatpush1.msra.mxu0 0.0
    %1473 = vmatprep.subr.mxu0 0.0
    %1474 = vmatpush1.msra.mxu0 0.0
    %1475 = vmatprep.subr.mxu0 0.0
    %1476 = vmatpush1.msra.mxu0 0.0
    %1477 = vmatprep.subr.mxu0 0.0
    %1478 = vmatpush1.msra.mxu0 0.0
    %1479 = vmatprep.subr.mxu0 0.0
    %1480 = vmatpush1.msra.mxu0 0.0
    %1481 = vmatprep.subr.mxu0 0.0
    %1482 = vmatpush1.msra.mxu0 0.0
    %1483 = vmatprep.subr.mxu0 0.0
    %1484 = vmatpush1.msra.mxu0 0.0
    %1485 = vmatprep.mubr.f32.mxu0 0.0
    %1486 = vmatmul.mubr.f32.gmra.mrb[0].mxu0 %v1419
    %v1487 = vpop.f32.mrb[0].mxu0
    %v1488 = vadd.f32 0.0, %v1487
    %v1489 = vpop.f32.mrb[0].mxu0
    %1490 = vdwg.mxu0
    %v1491 = vsel %vm113, %v1488, 0.0
    %v1492 = vrot.slane %v1491, 4
    %v1493 = vadd.f32 %v1491, %v1492
    %v1494 = vrot.slane %v1493, 2
    %v1495 = vadd.f32 %v1493, %v1494
    %v1496 = vrot.slane %v1495, 1
    %v1497 = vadd.f32 %v1495, %v1496
    %v1498 = vsel %vm234, %v1320, %v1497
    %vm1499 = vcmask 254976
    %1500 = vst.msk [vmem:[#allocation8] sm:$0x3] %vm1499, %v1498
    // Predicated region
    $region38: #{tpu_custom_call.1} parent=1 // pred_check
      _
    $region39: #{tpu_custom_call.1} parent=1 // pred_check_branch
      %1502 = sbr.rel (0) target = $region41
    $region40: #{tpu_custom_call.1} parent=1 // pred_region
      %s1504 = ssub.s32 32, 32
      %1505 = vsyncadd [#allocation4], %s1504
      %s1507 = sshll.u32 [#allocation8], 4
      %s1508 = int_to_ptr.vmem [resolvable:$true] %s1507
      %1510 = dma.vmem_to_hbm [thread:$0]  %s1508, 32, %s6, [#allocation4]
    $region41: #{tpu_custom_call.1} parent=1 // pred_fallthru
      _
    // Predicated region
    $region42: #{tpu_custom_call.1} parent=1 // pred_check
      _
    $region43: #{tpu_custom_call.1} parent=1 // pred_check_branch
      %1512 = sbr.rel (0) target = $region45
    $region44: #{tpu_custom_call.1} parent=1 // pred_region
      %1513 = dma.done [#allocation4], 32
    $region45: #{tpu_custom_call.1} parent=1 // pred_fallthru
      _
    %1514 = vsyncpa [#allocation3], 1
    %1515 = vsyncpa [#allocation6], 1
    %1516 = vsyncpa [#allocation4], 1

</llo_original>
